<compile_context>
chip_gen: v7x
topology: tpu7x:2x2x1
jax: 0.10.0
libtpu: 0.0.40
codegen_flags: <defaults>
</compile_context>

<pallas_src>
import functools

import jax
import jax.numpy as jnp
from jax.experimental import pallas as pl
from jax.experimental.pallas import tpu as pltpu

EPS = 1e-5


# ------------------------------ Pallas kernels --------------------------------
def _conv1_stats_kernel(xm_ref, xh_ref, w1_ref, st_ref, *, tl, pad):
    """conv1 on one (batch, L-tile) block; emits only BN1 partial sums.

    xm_ref: (Cin, MW)  main window of the left-2*pad / right-Hw zero-padded x
    xh_ref: (Cin, Hw)  right-halo columns (head of the next window)
    w1_ref: (K, Cmid, Cin)
    st_ref: (Cmid, 2)  [:, 0] = sum, [:, 1] = sum of squares over this tile
    """
    k_taps = w1_ref.shape[0]
    cmid = w1_ref.shape[1]
    win = jnp.concatenate([xm_ref[...], xh_ref[...]], axis=-1)
    acc = jnp.zeros((cmid, tl), jnp.float32)
    for k in range(k_taps):  # accumulating dots: no im2col materialization
        acc += jnp.dot(w1_ref[k], win[:, pad + k:pad + k + tl],
                       preferred_element_type=jnp.float32)
    st_ref[...] = jnp.concatenate(
        [jnp.sum(acc, axis=-1, keepdims=True),
         jnp.sum(acc * acc, axis=-1, keepdims=True)], axis=-1)


def _conv1_bn_relu_conv2_kernel(xm_ref, xh_ref, w1_ref, w2_ref, sc1_ref,
                                sh1_ref, y2_ref, st_ref, *, tl, pad, seq_len):
    """Recompute conv1 on an extended window, bn1 + relu, conv2; y2 + BN2 stats."""
    k_taps = w1_ref.shape[0]
    cmid = w1_ref.shape[1]
    tle = tl + 2 * pad
    win = jnp.concatenate([xm_ref[...], xh_ref[...]], axis=-1)

    # conv1 over the extended window [base - pad, base + tl + pad)
    acc1 = jnp.zeros((cmid, tle), jnp.float32)
    for k in range(k_taps):
        acc1 += jnp.dot(w1_ref[k], win[:, k:k + tle],
                        preferred_element_type=jnp.float32)

    # bn1 (precomputed scale/shift, f32) + relu
    h = jnp.maximum(acc1 * sc1_ref[...] + sh1_ref[...], 0.0)
    # conv2 zero-pads AFTER bn1+relu -> mask positions outside [0, seq_len)
    base = pl.program_id(1) * tl
    pos = base - pad + jax.lax.broadcasted_iota(jnp.int32, (1, tle), 1)
    h = jnp.where((pos >= 0) & (pos < seq_len), h, 0.0)
    h = h.astype(w2_ref.dtype)

    acc2 = jnp.zeros((cmid, tl), jnp.float32)
    for k in range(k_taps):
        acc2 += jnp.dot(w2_ref[k], h[:, k:k + tl],
                        preferred_element_type=jnp.float32)

    y2_ref[...] = acc2.astype(y2_ref.dtype)
    st_ref[...] = jnp.concatenate(
        [jnp.sum(acc2, axis=-1, keepdims=True),
         jnp.sum(acc2 * acc2, axis=-1, keepdims=True)], axis=-1)


def _bn2_shortcut_relu_kernel(y2_ref, sc2_ref, sh2_ref, x_ref, o_ref):
    """bn2 (precomputed scale/shift) + channel-zero-pad shortcut + relu."""
    y = y2_ref[...].astype(jnp.float32) * sc2_ref[...] + sh2_ref[...]
    x = x_ref[...].astype(jnp.float32)
    cin, tl = x.shape
    cmid = y.shape[0]
    if cin < cmid:  # channel zero-pad shortcut == sublane concat with zeros
        x = jnp.concatenate([x, jnp.zeros((cmid - cin, tl), jnp.float32)],
                            axis=0)
    o_ref[...] = jnp.maximum(y + x, 0.0).astype(o_ref.dtype)


# --------------------------------- wrapper -------------------------------------
def _choose_tile(length):
    """Largest 128-multiple tile that divides L, else the full length."""
    for cand in (512, 384, 256, 128):
        if length % cand == 0:
            return cand
    return length


def _bn_affine(st, count, gamma, beta):
    """Fold training-mode BN (batch mean, biased var) into scale/shift (f32)."""
    tot = jnp.sum(st.astype(jnp.float32), axis=(0, 1))          # (Cmid, 2)
    mean = tot[:, 0] / count
    # E[y^2] - mean^2 with a clamp; fine for BN-scale activations, documented
    # caveat: can cancel if |mean| >> std over very long sequences.
    var = jnp.maximum(tot[:, 1] / count - mean * mean, 0.0)
    inv = jax.lax.rsqrt(var + EPS)
    scale = gamma.astype(jnp.float32) * inv
    shift = beta.astype(jnp.float32) - mean * scale
    return scale.reshape(-1, 1), shift.reshape(-1, 1)


@functools.partial(jax.jit, static_argnames=("kernel_size", "compute_dtype"))
def resblock1d_forward(x_ncl, w1, g1, b1, w2, g2, b2, kernel_size=3,
                       compute_dtype=jnp.bfloat16):
    """ResBlock1D forward (training-mode BatchNorm), stride=1 path.

    x_ncl: (B, Cin, L) f32 (PyTorch NCW). w1: (Cmid, Cin, K), w2: (Cmid, Cmid, K).
    Returns (B, Cmid, L) f32.
    """
    B, Cin, L = x_ncl.shape
    Cmid = w1.shape[0]
    K = kernel_size
    pad = K // 2
    if Cin > Cmid:
        raise ValueError("channel-zero-pad shortcut requires in_planes <= planes")
    # TODO(synk): stride != 1 (Conv1d+BN projection shortcut) and eval-mode
    # (running-stat) BatchNorm are not implemented; this is the module's
    # default stride=1, training-mode forward.

    cd = jnp.dtype(compute_dtype)
    TL = _choose_tile(L)
    nL = L // TL
    Hw = max(4 * pad, 1)                   # right-halo width fed to every tile
    Lpp = L + 2 * pad + Hw                 # 2*pad left zeros, Hw right zeros
    MW = TL if nL > 1 else Lpp             # main-window block width along L

    # Layout glue (XLA, outside the kernels). No activation transposes.
    xpp = jnp.pad(x_ncl, ((0, 0), (0, 0), (2 * pad, Hw))).astype(cd)
    halo = jnp.stack([xpp[:, :, (l + 1) * TL:(l + 1) * TL + Hw]
                      for l in range(nL)], axis=1)             # (B, nL, Cin, Hw)
    x_sc = x_ncl.astype(cd)                                    # shortcut input
    w1t = jnp.transpose(w1, (2, 0, 1)).astype(cd)              # (K, Cmid, Cin)
    w2t = jnp.transpose(w2, (2, 0, 1)).astype(cd)              # (K, Cmid, Cmid)

    grid = (B, nL)
    x_main_spec = pl.BlockSpec((None, Cin, MW), lambda b, l: (b, 0, l))
    x_halo_spec = pl.BlockSpec((None, None, Cin, Hw), lambda b, l: (b, l, 0, 0))
    w1_spec = pl.BlockSpec((K, Cmid, Cin), lambda b, l: (0, 0, 0))
    w2_spec = pl.BlockSpec((K, Cmid, Cmid), lambda b, l: (0, 0, 0))
    vec_spec = pl.BlockSpec((Cmid, 1), lambda b, l: (0, 0))
    st_spec = pl.BlockSpec((None, None, Cmid, 2), lambda b, l: (b, l, 0, 0))
    seq_spec_mid = pl.BlockSpec((None, Cmid, TL), lambda b, l: (b, 0, l))
    seq_spec_in = pl.BlockSpec((None, Cin, TL), lambda b, l: (b, 0, l))

    cparams = pltpu.CompilerParams(
        dimension_semantics=("parallel", "parallel"),   # v7x: both TCs busy
        vmem_limit_bytes=32 * 1024 * 1024)              # safe on v7x's 64 MiB

    bpe = cd.itemsize
    xin_bytes = B * Cin * (Lpp + nL * Hw) * bpe
    st_bytes = B * nL * Cmid * 2 * 4
    ce1 = pl.CostEstimate(
        flops=2 * B * L * K * Cin * Cmid, transcendentals=0,
        bytes_accessed=int(xin_bytes + K * Cmid * Cin * bpe + st_bytes))
    ce2 = pl.CostEstimate(
        flops=(2 * B * (L + 2 * pad * nL) * K * Cin * Cmid
               + 2 * B * L * K * Cmid * Cmid),
        transcendentals=0,
        bytes_accessed=int(xin_bytes + K * Cmid * (Cin + Cmid) * bpe
                           + B * Cmid * L * bpe + st_bytes + 8 * Cmid))
    ce3 = pl.CostEstimate(
        flops=4 * B * L * Cmid, transcendentals=0,
        bytes_accessed=int(B * Cmid * L * bpe + B * Cin * L * bpe
                           + B * Cmid * L * 4 + 8 * Cmid))

    # ---- pass 1: conv1 -> BN1 partial statistics (y1 never written) --------
    st1 = pl.pallas_call(
        functools.partial(_conv1_stats_kernel, tl=TL, pad=pad),
        grid=grid,
        in_specs=[x_main_spec, x_halo_spec, w1_spec],
        out_specs=st_spec,
        out_shape=jax.ShapeDtypeStruct((B, nL, Cmid, 2), jnp.float32),
        compiler_params=cparams,
        cost_estimate=ce1,
    )(xpp, halo, w1t)
    scale1, shift1 = _bn_affine(st1, B * L, g1, b1)

    # ---- pass 2: conv1 (recompute) + bn1 + relu + conv2 -> y2 + BN2 stats ---
    y2, st2 = pl.pallas_call(
        functools.partial(_conv1_bn_relu_conv2_kernel, tl=TL, pad=pad,
                          seq_len=L),
        grid=grid,
        in_specs=[x_main_spec, x_halo_spec, w1_spec, w2_spec, vec_spec,
                  vec_spec],
        out_specs=(seq_spec_mid, st_spec),
        out_shape=(jax.ShapeDtypeStruct((B, Cmid, L), cd),
                   jax.ShapeDtypeStruct((B, nL, Cmid, 2), jnp.float32)),
        compiler_params=cparams,
        cost_estimate=ce2,
    )(xpp, halo, w1t, w2t, scale1, shift1)
    scale2, shift2 = _bn_affine(st2, B * L, g2, b2)

    # ---- pass 3: bn2 + channel-zero-pad shortcut + relu ---------------------
    out = pl.pallas_call(
        _bn2_shortcut_relu_kernel,
        grid=grid,
        in_specs=[seq_spec_mid, vec_spec, vec_spec, seq_spec_in],
        out_specs=seq_spec_mid,
        out_shape=jax.ShapeDtypeStruct((B, Cmid, L), jnp.float32),
        compiler_params=cparams,
        cost_estimate=ce3,
    )(y2, scale2, shift2, x_sc)
    return out


# ----------------------- pure-JAX reference (PyTorch semantics) ----------------
def _conv1d_ref(x_ncl, w_oik, pad):
    return jax.lax.conv_general_dilated(
        x_ncl, w_oik, window_strides=(1,), padding=[(pad, pad)],
        dimension_numbers=("NCH", "OIH", "NCH"))


def _bn_train_ref(x_ncl, gamma, beta):
    mean = jnp.mean(x_ncl, axis=(0, 2), keepdims=True)
    var = jnp.mean((x_ncl - mean) ** 2, axis=(0, 2), keepdims=True)
    return ((x_ncl - mean) / jnp.sqrt(var + EPS) * gamma[None, :, None]
            + beta[None, :, None])


def resblock1d_reference(x_ncl, w1, g1, b1, w2, g2, b2, kernel_size=3):
    pad = kernel_size // 2
    planes = w1.shape[0]
    out = jax.nn.relu(_bn_train_ref(_conv1d_ref(x_ncl, w1, pad), g1, b1))
    out = _bn_train_ref(_conv1d_ref(out, w2, pad), g2, b2)
    sc = jnp.pad(x_ncl, ((0, 0), (0, planes - x_ncl.shape[1]), (0, 0)))
    return jax.nn.relu(out + sc)


if __name__ == "__main__":
    def _run_case(B, Cin, Cmid, L, K):
        key = jax.random.PRNGKey(0)
        ks = jax.random.split(key, 7)
        x = jax.random.normal(ks[0], (B, Cin, L), jnp.float32)     # NCW (PyTorch)
        w1 = 0.2 * jax.random.normal(ks[1], (Cmid, Cin, K), jnp.float32)
        w2 = 0.2 * jax.random.normal(ks[2], (Cmid, Cmid, K), jnp.float32)
        g1 = 1.0 + 0.1 * jax.random.normal(ks[3], (Cmid,), jnp.float32)
        b1 = 0.1 * jax.random.normal(ks[4], (Cmid,), jnp.float32)
        g2 = 1.0 + 0.1 * jax.random.normal(ks[5], (Cmid,), jnp.float32)
        b2 = 0.1 * jax.random.normal(ks[6], (Cmid,), jnp.float32)

        ref = resblock1d_reference(x, w1, g1, b1, w2, g2, b2, kernel_size=K)

        # f32 MXU path: tight check.
        out_f32 = jax.block_until_ready(resblock1d_forward(
            x, w1, g1, b1, w2, g2, b2, kernel_size=K,
            compute_dtype=jnp.float32))
        assert out_f32.shape == (B, Cmid, L)
        assert jnp.allclose(out_f32, ref, atol=2e-3, rtol=2e-3), (
            f"f32 max abs err = {jnp.max(jnp.abs(out_f32 - ref))}")

        # bf16 MXU path (v6e/v7x-friendly): bf16 matmul inputs, f32 accumulate
        # and f32 BN math; batch statistics come from the bf16-input convs, so
        # compare with a relative-L2 sanity check.
        out_bf16 = jax.block_until_ready(resblock1d_forward(
            x, w1, g1, b1, w2, g2, b2, kernel_size=K,
            compute_dtype=jnp.bfloat16))
        assert out_bf16.shape == (B, Cmid, L)
        rel = (jnp.linalg.norm(out_bf16 - ref)
               / jnp.maximum(jnp.linalg.norm(ref), 1e-6))
        assert float(rel) < 3e-2, f"bf16 relative L2 err = {float(rel)}"

    _run_case(B=2, Cin=4, Cmid=8, L=16, K=3)    # small: single L tile (TL = L)
    _run_case(B=2, Cin=4, Cmid=8, L=640, K=3)   # tiled path: TL=128, 5 tiles/batch
    print("KERNEL_OK")
</pallas_src>

<mosaic_0001>
module attributes {stable_mosaic.version = 11 : i64} {
  func.func @_conv1_stats_kernel(%arg0: i32, %arg1: i32, %arg2: memref<1x4x22xf32, #tpu.memory_space<vmem>>, %arg3: memref<1x1x4x4xf32, #tpu.memory_space<vmem>>, %arg4: memref<3x8x4xf32, #tpu.memory_space<vmem>>, %arg5: memref<1x1x8x2xf32, #tpu.memory_space<vmem>>) attributes {dimension_semantics = [#tpu.dimension_semantics<parallel>, #tpu.dimension_semantics<parallel>], iteration_bounds = array<i64: 2, 1>, scalar_prefetch = 0 : i64, scratch_operands = 0 : i64, tpu.core_type = #tpu.core_type<tc>, window_params = [{transform_indices = @transform_0, window_bounds = array<i64: 1, 4, 22>}, {transform_indices = @transform_1, window_bounds = array<i64: 1, 1, 4, 4>}, {pipeline_mode = #tpu.pipeline_mode<synchronous>, transform_indices = @transform_2, window_bounds = array<i64: 3, 8, 4>}, {transform_indices = @transform_3, window_bounds = array<i64: 1, 1, 8, 2>}]} {
    %c0 = arith.constant 0 : index
    %c0_0 = arith.constant 0 : index
    %c0_1 = arith.constant 0 : index
    %0 = vector.load %arg2[%c0, %c0_0, %c0_1] : memref<1x4x22xf32, #tpu.memory_space<vmem>>, vector<1x4x22xf32>
    %1 = vector.shape_cast %0 : vector<1x4x22xf32> to vector<4x22xf32>
    %c0_2 = arith.constant 0 : index
    %c0_3 = arith.constant 0 : index
    %c0_4 = arith.constant 0 : index
    %c0_5 = arith.constant 0 : index
    %2 = vector.load %arg3[%c0_2, %c0_3, %c0_4, %c0_5] : memref<1x1x4x4xf32, #tpu.memory_space<vmem>>, vector<1x1x4x4xf32>
    %3 = vector.shape_cast %2 : vector<1x1x4x4xf32> to vector<4x4xf32>
    %4 = tpu.concatenate %1, %3 in 1 : vector<4x22xf32>, vector<4x4xf32> -> vector<4x26xf32>
    %cst = arith.constant 0.000000e+00 : f32
    %5 = vector.broadcast %cst : f32 to vector<8x16xf32>
    %c0_6 = arith.constant 0 : index
    %c0_7 = arith.constant 0 : index
    %c0_8 = arith.constant 0 : index
    %6 = vector.load %arg4[%c0_6, %c0_7, %c0_8] : memref<3x8x4xf32, #tpu.memory_space<vmem>>, vector<1x8x4xf32>
    %7 = vector.shape_cast %6 : vector<1x8x4xf32> to vector<8x4xf32>
    %8 = vector.extract_strided_slice %4 {offsets = [0, 1], sizes = [4, 16], strides = [1, 1]} : vector<4x26xf32> to vector<4x16xf32>
    %cst_9 = arith.constant dense<0.000000e+00> : vector<8x16xf32>
    %9 = tpu.matmul %7, %8, %cst_9 {dimension_numbers = #tpu.dot_dimension_numbers<[1], [0], [0], [1], [0, 0, 1, 1], [], []>} : vector<8x4xf32>, vector<4x16xf32>, vector<8x16xf32> -> vector<8x16xf32>
    %10 = arith.addf %5, %9 : vector<8x16xf32>
    %c1 = arith.constant 1 : index
    %c0_10 = arith.constant 0 : index
    %c0_11 = arith.constant 0 : index
    %11 = vector.load %arg4[%c1, %c0_10, %c0_11] : memref<3x8x4xf32, #tpu.memory_space<vmem>>, vector<1x8x4xf32>
    %12 = vector.shape_cast %11 : vector<1x8x4xf32> to vector<8x4xf32>
    %13 = vector.extract_strided_slice %4 {offsets = [0, 2], sizes = [4, 16], strides = [1, 1]} : vector<4x26xf32> to vector<4x16xf32>
    %cst_12 = arith.constant dense<0.000000e+00> : vector<8x16xf32>
    %14 = tpu.matmul %12, %13, %cst_12 {dimension_numbers = #tpu.dot_dimension_numbers<[1], [0], [0], [1], [0, 0, 1, 1], [], []>} : vector<8x4xf32>, vector<4x16xf32>, vector<8x16xf32> -> vector<8x16xf32>
    %15 = arith.addf %10, %14 : vector<8x16xf32>
    %c2 = arith.constant 2 : index
    %c0_13 = arith.constant 0 : index
    %c0_14 = arith.constant 0 : index
    %16 = vector.load %arg4[%c2, %c0_13, %c0_14] : memref<3x8x4xf32, #tpu.memory_space<vmem>>, vector<1x8x4xf32>
    %17 = vector.shape_cast %16 : vector<1x8x4xf32> to vector<8x4xf32>
    %18 = vector.extract_strided_slice %4 {offsets = [0, 3], sizes = [4, 16], strides = [1, 1]} : vector<4x26xf32> to vector<4x16xf32>
    %cst_15 = arith.constant dense<0.000000e+00> : vector<8x16xf32>
    %19 = tpu.matmul %17, %18, %cst_15 {dimension_numbers = #tpu.dot_dimension_numbers<[1], [0], [0], [1], [0, 0, 1, 1], [], []>} : vector<8x4xf32>, vector<4x16xf32>, vector<8x16xf32> -> vector<8x16xf32>
    %20 = arith.addf %15, %19 : vector<8x16xf32>
    %cst_16 = arith.constant dense<0.000000e+00> : vector<8xf32>
    %21 = vector.multi_reduction <add>, %20, %cst_16 [1] : vector<8x16xf32> to vector<8xf32>
    %22 = vector.shape_cast %21 : vector<8xf32> to vector<8x1xf32>
    %23 = arith.mulf %20, %20 : vector<8x16xf32>
    %cst_17 = arith.constant dense<0.000000e+00> : vector<8xf32>
    %24 = vector.multi_reduction <add>, %23, %cst_17 [1] : vector<8x16xf32> to vector<8xf32>
    %25 = vector.shape_cast %24 : vector<8xf32> to vector<8x1xf32>
    %26 = tpu.concatenate %22, %25 in 1 : vector<8x1xf32>, vector<8x1xf32> -> vector<8x2xf32>
    %c0_18 = arith.constant 0 : index
    %c0_19 = arith.constant 0 : index
    %c0_20 = arith.constant 0 : index
    %c0_21 = arith.constant 0 : index
    %27 = vector.load %arg5[%c0_18, %c0_19, %c0_20, %c0_21] : memref<1x1x8x2xf32, #tpu.memory_space<vmem>>, vector<1x1x8x2xf32>
    %28 = vector.shape_cast %27 : vector<1x1x8x2xf32> to vector<8x2xf32>
    %29 = vector.shape_cast %26 : vector<8x2xf32> to vector<1x1x8x2xf32>
    tpu.vector_store %arg5[%c0_18, %c0_19, %c0_20, %c0_21], %29 {strides = array<i32>} : memref<1x1x8x2xf32, #tpu.memory_space<vmem>>, vector<1x1x8x2xf32>,
    return
  }
  func.func @transform_0(%arg0: i32, %arg1: i32) -> (i32, i32, i32) {
    %c0_i32 = arith.constant 0 : i32
    %c0_i32_0 = arith.constant 0 : i32
    return %arg0, %c0_i32, %arg1 : i32, i32, i32
  }
  func.func @transform_1(%arg0: i32, %arg1: i32) -> (i32, i32, i32, i32) {
    %c0_i32 = arith.constant 0 : i32
    %c0_i32_0 = arith.constant 0 : i32
    %c0_i32_1 = arith.constant 0 : i32
    return %arg0, %arg1, %c0_i32, %c0_i32_0 : i32, i32, i32, i32
  }
  func.func @transform_2(%arg0: i32, %arg1: i32) -> (i32, i32, i32) {
    %c0_i32 = arith.constant 0 : i32
    %c0_i32_0 = arith.constant 0 : i32
    %c0_i32_1 = arith.constant 0 : i32
    %c0_i32_2 = arith.constant 0 : i32
    return %c0_i32, %c0_i32_0, %c0_i32_1 : i32, i32, i32
  }
  func.func @transform_3(%arg0: i32, %arg1: i32) -> (i32, i32, i32, i32) {
    %c0_i32 = arith.constant 0 : i32
    %c0_i32_0 = arith.constant 0 : i32
    %c0_i32_1 = arith.constant 0 : i32
    return %arg0, %arg1, %c0_i32, %c0_i32_0 : i32, i32, i32, i32
  }
}

module attributes {stable_mosaic.version = 11 : i64} {
  func.func @_bn2_shortcut_relu_kernel(%arg0: i32, %arg1: i32, %arg2: memref<1x8x16xf32, #tpu.memory_space<vmem>>, %arg3: memref<8x1xf32, #tpu.memory_space<vmem>>, %arg4: memref<8x1xf32, #tpu.memory_space<vmem>>, %arg5: memref<1x4x16xf32, #tpu.memory_space<vmem>>, %arg6: memref<1x8x16xf32, #tpu.memory_space<vmem>>) attributes {dimension_semantics = [#tpu.dimension_semantics<parallel>, #tpu.dimension_semantics<parallel>], iteration_bounds = array<i64: 2, 1>, scalar_prefetch = 0 : i64, scratch_operands = 0 : i64, tpu.core_type = #tpu.core_type<tc>, window_params = [{transform_indices = @transform_0, window_bounds = array<i64: 1, 8, 16>}, {pipeline_mode = #tpu.pipeline_mode<synchronous>, transform_indices = @transform_1, window_bounds = array<i64: 8, 1>}, {pipeline_mode = #tpu.pipeline_mode<synchronous>, transform_indices = @transform_2, window_bounds = array<i64: 8, 1>}, {transform_indices = @transform_3, window_bounds = array<i64: 1, 4, 16>}, {transform_indices = @transform_4, window_bounds = array<i64: 1, 8, 16>}]} {
    %c0 = arith.constant 0 : index
    %c0_0 = arith.constant 0 : index
    %c0_1 = arith.constant 0 : index
    %0 = vector.load %arg2[%c0, %c0_0, %c0_1] : memref<1x8x16xf32, #tpu.memory_space<vmem>>, vector<1x8x16xf32>
    %1 = vector.shape_cast %0 : vector<1x8x16xf32> to vector<8x16xf32>
    %c0_2 = arith.constant 0 : index
    %c0_3 = arith.constant 0 : index
    %2 = vector.load %arg3[%c0_2, %c0_3] : memref<8x1xf32, #tpu.memory_space<vmem>>, vector<8x1xf32>
    %3 = vector.broadcast %2 : vector<8x1xf32> to vector<8x16xf32>
    %4 = arith.mulf %1, %3 : vector<8x16xf32>
    %c0_4 = arith.constant 0 : index
    %c0_5 = arith.constant 0 : index
    %5 = vector.load %arg4[%c0_4, %c0_5] : memref<8x1xf32, #tpu.memory_space<vmem>>, vector<8x1xf32>
    %6 = vector.broadcast %5 : vector<8x1xf32> to vector<8x16xf32>
    %7 = arith.addf %4, %6 : vector<8x16xf32>
    %c0_6 = arith.constant 0 : index
    %c0_7 = arith.constant 0 : index
    %c0_8 = arith.constant 0 : index
    %8 = vector.load %arg5[%c0_6, %c0_7, %c0_8] : memref<1x4x16xf32, #tpu.memory_space<vmem>>, vector<1x4x16xf32>
    %9 = vector.shape_cast %8 : vector<1x4x16xf32> to vector<4x16xf32>
    %cst = arith.constant 0.000000e+00 : f32
    %10 = vector.broadcast %cst : f32 to vector<4x16xf32>
    %11 = tpu.concatenate %9, %10 in 0 : vector<4x16xf32>, vector<4x16xf32> -> vector<8x16xf32>
    %12 = arith.addf %7, %11 : vector<8x16xf32>
    %cst_9 = arith.constant 0.000000e+00 : f32
    %13 = vector.broadcast %cst_9 : f32 to vector<8x16xf32>
    %14 = arith.maximumf %12, %13 : vector<8x16xf32>
    %c0_10 = arith.constant 0 : index
    %c0_11 = arith.constant 0 : index
    %c0_12 = arith.constant 0 : index
    %15 = vector.load %arg6[%c0_10, %c0_11, %c0_12] : memref<1x8x16xf32, #tpu.memory_space<vmem>>, vector<1x8x16xf32>
    %16 = vector.shape_cast %15 : vector<1x8x16xf32> to vector<8x16xf32>
    %17 = vector.shape_cast %14 : vector<8x16xf32> to vector<1x8x16xf32>
    tpu.vector_store %arg6[%c0_10, %c0_11, %c0_12], %17 {strides = array<i32>} : memref<1x8x16xf32, #tpu.memory_space<vmem>>, vector<1x8x16xf32>,
    return
  }
  func.func @transform_0(%arg0: i32, %arg1: i32) -> (i32, i32, i32) {
    %c0_i32 = arith.constant 0 : i32
    %c0_i32_0 = arith.constant 0 : i32
    return %arg0, %c0_i32, %arg1 : i32, i32, i32
  }
  func.func @transform_1(%arg0: i32, %arg1: i32) -> (i32, i32) {
    %c0_i32 = arith.constant 0 : i32
    %c0_i32_0 = arith.constant 0 : i32
    %c0_i32_1 = arith.constant 0 : i32
    return %c0_i32, %c0_i32_0 : i32, i32
  }
  func.func @transform_2(%arg0: i32, %arg1: i32) -> (i32, i32) {
    %c0_i32 = arith.constant 0 : i32
    %c0_i32_0 = arith.constant 0 : i32
    %c0_i32_1 = arith.constant 0 : i32
    return %c0_i32, %c0_i32_0 : i32, i32
  }
  func.func @transform_3(%arg0: i32, %arg1: i32) -> (i32, i32, i32) {
    %c0_i32 = arith.constant 0 : i32
    %c0_i32_0 = arith.constant 0 : i32
    return %arg0, %c0_i32, %arg1 : i32, i32, i32
  }
  func.func @transform_4(%arg0: i32, %arg1: i32) -> (i32, i32, i32) {
    %c0_i32 = arith.constant 0 : i32
    %c0_i32_0 = arith.constant 0 : i32
    return %arg0, %c0_i32, %arg1 : i32, i32, i32
  }
}

module attributes {stable_mosaic.version = 11 : i64} {
  func.func @_conv1_bn_relu_conv2_kernel(%arg0: i32, %arg1: i32, %arg2: memref<1x4x22xf32, #tpu.memory_space<vmem>>, %arg3: memref<1x1x4x4xf32, #tpu.memory_space<vmem>>, %arg4: memref<3x8x4xf32, #tpu.memory_space<vmem>>, %arg5: memref<3x8x8xf32, #tpu.memory_space<vmem>>, %arg6: memref<8x1xf32, #tpu.memory_space<vmem>>, %arg7: memref<8x1xf32, #tpu.memory_space<vmem>>, %arg8: memref<1x8x16xf32, #tpu.memory_space<vmem>>, %arg9: memref<1x1x8x2xf32, #tpu.memory_space<vmem>>) attributes {dimension_semantics = [#tpu.dimension_semantics<parallel>, #tpu.dimension_semantics<parallel>], iteration_bounds = array<i64: 2, 1>, scalar_prefetch = 0 : i64, scratch_operands = 0 : i64, tpu.core_type = #tpu.core_type<tc>, window_params = [{transform_indices = @transform_0, window_bounds = array<i64: 1, 4, 22>}, {transform_indices = @transform_1, window_bounds = array<i64: 1, 1, 4, 4>}, {pipeline_mode = #tpu.pipeline_mode<synchronous>, transform_indices = @transform_2, window_bounds = array<i64: 3, 8, 4>}, {pipeline_mode = #tpu.pipeline_mode<synchronous>, transform_indices = @transform_3, window_bounds = array<i64: 3, 8, 8>}, {pipeline_mode = #tpu.pipeline_mode<synchronous>, transform_indices = @transform_4, window_bounds = array<i64: 8, 1>}, {pipeline_mode = #tpu.pipeline_mode<synchronous>, transform_indices = @transform_5, window_bounds = array<i64: 8, 1>}, {transform_indices = @transform_6, window_bounds = array<i64: 1, 8, 16>}, {transform_indices = @transform_7, window_bounds = array<i64: 1, 1, 8, 2>}]} {
    %c0 = arith.constant 0 : index
    %c0_0 = arith.constant 0 : index
    %c0_1 = arith.constant 0 : index
    %0 = vector.load %arg2[%c0, %c0_0, %c0_1] : memref<1x4x22xf32, #tpu.memory_space<vmem>>, vector<1x4x22xf32>
    %1 = vector.shape_cast %0 : vector<1x4x22xf32> to vector<4x22xf32>
    %c0_2 = arith.constant 0 : index
    %c0_3 = arith.constant 0 : index
    %c0_4 = arith.constant 0 : index
    %c0_5 = arith.constant 0 : index
    %2 = vector.load %arg3[%c0_2, %c0_3, %c0_4, %c0_5] : memref<1x1x4x4xf32, #tpu.memory_space<vmem>>, vector<1x1x4x4xf32>
    %3 = vector.shape_cast %2 : vector<1x1x4x4xf32> to vector<4x4xf32>
    %4 = tpu.concatenate %1, %3 in 1 : vector<4x22xf32>, vector<4x4xf32> -> vector<4x26xf32>
    %cst = arith.constant 0.000000e+00 : f32
    %5 = vector.broadcast %cst : f32 to vector<8x18xf32>
    %c0_6 = arith.constant 0 : index
    %c0_7 = arith.constant 0 : index
    %c0_8 = arith.constant 0 : index
    %6 = vector.load %arg4[%c0_6, %c0_7, %c0_8] : memref<3x8x4xf32, #tpu.memory_space<vmem>>, vector<1x8x4xf32>
    %7 = vector.shape_cast %6 : vector<1x8x4xf32> to vector<8x4xf32>
    %8 = vector.extract_strided_slice %4 {offsets = [0, 0], sizes = [4, 18], strides = [1, 1]} : vector<4x26xf32> to vector<4x18xf32>
    %cst_9 = arith.constant dense<0.000000e+00> : vector<8x18xf32>
    %9 = tpu.matmul %7, %8, %cst_9 {dimension_numbers = #tpu.dot_dimension_numbers<[1], [0], [0], [1], [0, 0, 1, 1], [], []>} : vector<8x4xf32>, vector<4x18xf32>, vector<8x18xf32> -> vector<8x18xf32>
    %10 = arith.addf %5, %9 : vector<8x18xf32>
    %c1 = arith.constant 1 : index
    %c0_10 = arith.constant 0 : index
    %c0_11 = arith.constant 0 : index
    %11 = vector.load %arg4[%c1, %c0_10, %c0_11] : memref<3x8x4xf32, #tpu.memory_space<vmem>>, vector<1x8x4xf32>
    %12 = vector.shape_cast %11 : vector<1x8x4xf32> to vector<8x4xf32>
    %13 = vector.extract_strided_slice %4 {offsets = [0, 1], sizes = [4, 18], strides = [1, 1]} : vector<4x26xf32> to vector<4x18xf32>
    %cst_12 = arith.constant dense<0.000000e+00> : vector<8x18xf32>
    %14 = tpu.matmul %12, %13, %cst_12 {dimension_numbers = #tpu.dot_dimension_numbers<[1], [0], [0], [1], [0, 0, 1, 1], [], []>} : vector<8x4xf32>, vector<4x18xf32>, vector<8x18xf32> -> vector<8x18xf32>
    %15 = arith.addf %10, %14 : vector<8x18xf32>
    %c2 = arith.constant 2 : index
    %c0_13 = arith.constant 0 : index
    %c0_14 = arith.constant 0 : index
    %16 = vector.load %arg4[%c2, %c0_13, %c0_14] : memref<3x8x4xf32, #tpu.memory_space<vmem>>, vector<1x8x4xf32>
    %17 = vector.shape_cast %16 : vector<1x8x4xf32> to vector<8x4xf32>
    %18 = vector.extract_strided_slice %4 {offsets = [0, 2], sizes = [4, 18], strides = [1, 1]} : vector<4x26xf32> to vector<4x18xf32>
    %cst_15 = arith.constant dense<0.000000e+00> : vector<8x18xf32>
    %19 = tpu.matmul %17, %18, %cst_15 {dimension_numbers = #tpu.dot_dimension_numbers<[1], [0], [0], [1], [0, 0, 1, 1], [], []>} : vector<8x4xf32>, vector<4x18xf32>, vector<8x18xf32> -> vector<8x18xf32>
    %20 = arith.addf %15, %19 : vector<8x18xf32>
    %c0_16 = arith.constant 0 : index
    %c0_17 = arith.constant 0 : index
    %21 = vector.load %arg6[%c0_16, %c0_17] : memref<8x1xf32, #tpu.memory_space<vmem>>, vector<8x1xf32>
    %22 = vector.broadcast %21 : vector<8x1xf32> to vector<8x18xf32>
    %23 = arith.mulf %20, %22 : vector<8x18xf32>
    %c0_18 = arith.constant 0 : index
    %c0_19 = arith.constant 0 : index
    %24 = vector.load %arg7[%c0_18, %c0_19] : memref<8x1xf32, #tpu.memory_space<vmem>>, vector<8x1xf32>
    %25 = vector.broadcast %24 : vector<8x1xf32> to vector<8x18xf32>
    %26 = arith.addf %23, %25 : vector<8x18xf32>
    %cst_20 = arith.constant 0.000000e+00 : f32
    %27 = vector.broadcast %cst_20 : f32 to vector<8x18xf32>
    %28 = arith.maximumf %26, %27 : vector<8x18xf32>
    %c16_i32 = arith.constant 16 : i32
    %29 = arith.muli %arg1, %c16_i32 : i32
    %c1_i32 = arith.constant 1 : i32
    %30 = arith.subi %29, %c1_i32 : i32
    %31 = tpu.iota {dimensions = array<i32: 1>} : vector<1x18xi32>
    %32 = vector.broadcast %30 : i32 to vector<1x18xi32>
    %33 = arith.addi %32, %31 : vector<1x18xi32>
    %c0_i32 = arith.constant 0 : i32
    %34 = vector.broadcast %c0_i32 : i32 to vector<1x18xi32>
    %35 = arith.cmpi sge, %33, %34 : vector<1x18xi32>
    %c16_i32_21 = arith.constant 16 : i32
    %36 = vector.broadcast %c16_i32_21 : i32 to vector<1x18xi32>
    %37 = arith.cmpi slt, %33, %36 : vector<1x18xi32>
    %38 = arith.andi %35, %37 : vector<1x18xi1>
    %cst_22 = arith.constant 0.000000e+00 : f32
    %39 = vector.shape_cast %38 : vector<1x18xi1> to vector<1x18xi1>
    %40 = vector.broadcast %39 : vector<1x18xi1> to vector<8x18xi1>
    %41 = vector.broadcast %cst_22 : f32 to vector<8x18xf32>
    %42 = arith.select %40, %28, %41 : vector<8x18xi1>, vector<8x18xf32>
    %cst_23 = arith.constant 0.000000e+00 : f32
    %43 = vector.broadcast %cst_23 : f32 to vector<8x16xf32>
    %c0_24 = arith.constant 0 : index
    %c0_25 = arith.constant 0 : index
    %c0_26 = arith.constant 0 : index
    %44 = vector.load %arg5[%c0_24, %c0_25, %c0_26] : memref<3x8x8xf32, #tpu.memory_space<vmem>>, vector<1x8x8xf32>
    %45 = vector.shape_cast %44 : vector<1x8x8xf32> to vector<8x8xf32>
    %46 = vector.extract_strided_slice %42 {offsets = [0, 0], sizes = [8, 16], strides = [1, 1]} : vector<8x18xf32> to vector<8x16xf32>
    %cst_27 = arith.constant dense<0.000000e+00> : vector<8x16xf32>
    %47 = tpu.matmul %45, %46, %cst_27 {dimension_numbers = #tpu.dot_dimension_numbers<[1], [0], [0], [1], [0, 0, 1, 1], [], []>} : vector<8x8xf32>, vector<8x16xf32>, vector<8x16xf32> -> vector<8x16xf32>
    %48 = arith.addf %43, %47 : vector<8x16xf32>
    %c1_28 = arith.constant 1 : index
    %c0_29 = arith.constant 0 : index
    %c0_30 = arith.constant 0 : index
    %49 = vector.load %arg5[%c1_28, %c0_29, %c0_30] : memref<3x8x8xf32, #tpu.memory_space<vmem>>, vector<1x8x8xf32>
    %50 = vector.shape_cast %49 : vector<1x8x8xf32> to vector<8x8xf32>
    %51 = vector.extract_strided_slice %42 {offsets = [0, 1], sizes = [8, 16], strides = [1, 1]} : vector<8x18xf32> to vector<8x16xf32>
    %cst_31 = arith.constant dense<0.000000e+00> : vector<8x16xf32>
    %52 = tpu.matmul %50, %51, %cst_31 {dimension_numbers = #tpu.dot_dimension_numbers<[1], [0], [0], [1], [0, 0, 1, 1], [], []>} : vector<8x8xf32>, vector<8x16xf32>, vector<8x16xf32> -> vector<8x16xf32>
    %53 = arith.addf %48, %52 : vector<8x16xf32>
    %c2_32 = arith.constant 2 : index
    %c0_33 = arith.constant 0 : index
    %c0_34 = arith.constant 0 : index
    %54 = vector.load %arg5[%c2_32, %c0_33, %c0_34] : memref<3x8x8xf32, #tpu.memory_space<vmem>>, vector<1x8x8xf32>
    %55 = vector.shape_cast %54 : vector<1x8x8xf32> to vector<8x8xf32>
    %56 = vector.extract_strided_slice %42 {offsets = [0, 2], sizes = [8, 16], strides = [1, 1]} : vector<8x18xf32> to vector<8x16xf32>
    %cst_35 = arith.constant dense<0.000000e+00> : vector<8x16xf32>
    %57 = tpu.matmul %55, %56, %cst_35 {dimension_numbers = #tpu.dot_dimension_numbers<[1], [0], [0], [1], [0, 0, 1, 1], [], []>} : vector<8x8xf32>, vector<8x16xf32>, vector<8x16xf32> -> vector<8x16xf32>
    %58 = arith.addf %53, %57 : vector<8x16xf32>
    %c0_36 = arith.constant 0 : index
    %c0_37 = arith.constant 0 : index
    %c0_38 = arith.constant 0 : index
    %59 = vector.load %arg8[%c0_36, %c0_37, %c0_38] : memref<1x8x16xf32, #tpu.memory_space<vmem>>, vector<1x8x16xf32>
    %60 = vector.shape_cast %59 : vector<1x8x16xf32> to vector<8x16xf32>
    %61 = vector.shape_cast %58 : vector<8x16xf32> to vector<1x8x16xf32>
    tpu.vector_store %arg8[%c0_36, %c0_37, %c0_38], %61 {strides = array<i32>} : memref<1x8x16xf32, #tpu.memory_space<vmem>>, vector<1x8x16xf32>,
    %cst_39 = arith.constant dense<0.000000e+00> : vector<8xf32>
    %62 = vector.multi_reduction <add>, %58, %cst_39 [1] : vector<8x16xf32> to vector<8xf32>
    %63 = vector.shape_cast %62 : vector<8xf32> to vector<8x1xf32>
    %64 = arith.mulf %58, %58 : vector<8x16xf32>
    %cst_40 = arith.constant dense<0.000000e+00> : vector<8xf32>
    %65 = vector.multi_reduction <add>, %64, %cst_40 [1] : vector<8x16xf32> to vector<8xf32>
    %66 = vector.shape_cast %65 : vector<8xf32> to vector<8x1xf32>
    %67 = tpu.concatenate %63, %66 in 1 : vector<8x1xf32>, vector<8x1xf32> -> vector<8x2xf32>
    %c0_41 = arith.constant 0 : index
    %c0_42 = arith.constant 0 : index
    %c0_43 = arith.constant 0 : index
    %c0_44 = arith.constant 0 : index
    %68 = vector.load %arg9[%c0_41, %c0_42, %c0_43, %c0_44] : memref<1x1x8x2xf32, #tpu.memory_space<vmem>>, vector<1x1x8x2xf32>
    %69 = vector.shape_cast %68 : vector<1x1x8x2xf32> to vector<8x2xf32>
    %70 = vector.shape_cast %67 : vector<8x2xf32> to vector<1x1x8x2xf32>
    tpu.vector_store %arg9[%c0_41, %c0_42, %c0_43, %c0_44], %70 {strides = array<i32>} : memref<1x1x8x2xf32, #tpu.memory_space<vmem>>, vector<1x1x8x2xf32>,
    return
  }
  func.func @transform_0(%arg0: i32, %arg1: i32) -> (i32, i32, i32) {
    %c0_i32 = arith.constant 0 : i32
    %c0_i32_0 = arith.constant 0 : i32
    return %arg0, %c0_i32, %arg1 : i32, i32, i32
  }
  func.func @transform_1(%arg0: i32, %arg1: i32) -> (i32, i32, i32, i32) {
    %c0_i32 = arith.constant 0 : i32
    %c0_i32_0 = arith.constant 0 : i32
    %c0_i32_1 = arith.constant 0 : i32
    return %arg0, %arg1, %c0_i32, %c0_i32_0 : i32, i32, i32, i32
  }
  func.func @transform_2(%arg0: i32, %arg1: i32) -> (i32, i32, i32) {
    %c0_i32 = arith.constant 0 : i32
    %c0_i32_0 = arith.constant 0 : i32
    %c0_i32_1 = arith.constant 0 : i32
    %c0_i32_2 = arith.constant 0 : i32
    return %c0_i32, %c0_i32_0, %c0_i32_1 : i32, i32, i32
  }
  func.func @transform_3(%arg0: i32, %arg1: i32) -> (i32, i32, i32) {
    %c0_i32 = arith.constant 0 : i32
    %c0_i32_0 = arith.constant 0 : i32
    %c0_i32_1 = arith.constant 0 : i32
    %c0_i32_2 = arith.constant 0 : i32
    return %c0_i32, %c0_i32_0, %c0_i32_1 : i32, i32, i32
  }
  func.func @transform_4(%arg0: i32, %arg1: i32) -> (i32, i32) {
    %c0_i32 = arith.constant 0 : i32
    %c0_i32_0 = arith.constant 0 : i32
    %c0_i32_1 = arith.constant 0 : i32
    return %c0_i32, %c0_i32_0 : i32, i32
  }
  func.func @transform_5(%arg0: i32, %arg1: i32) -> (i32, i32) {
    %c0_i32 = arith.constant 0 : i32
    %c0_i32_0 = arith.constant 0 : i32
    %c0_i32_1 = arith.constant 0 : i32
    return %c0_i32, %c0_i32_0 : i32, i32
  }
  func.func @transform_6(%arg0: i32, %arg1: i32) -> (i32, i32, i32) {
    %c0_i32 = arith.constant 0 : i32
    %c0_i32_0 = arith.constant 0 : i32
    return %arg0, %c0_i32, %arg1 : i32, i32, i32
  }
  func.func @transform_7(%arg0: i32, %arg1: i32) -> (i32, i32, i32, i32) {
    %c0_i32 = arith.constant 0 : i32
    %c0_i32_0 = arith.constant 0 : i32
    %c0_i32_1 = arith.constant 0 : i32
    return %arg0, %arg1, %c0_i32, %c0_i32_0 : i32, i32, i32, i32
  }
}

</mosaic_0001>

<llo_original>
// kernel: resblock1d_forward.5
$region0: #{resblock1d_forward.5}
  #allocation0 [shape = 'u32[]', space=smem, size = 0x4, offset = 0x4, fixed_abs, tag = 'smem constant byte address 0x4 - core index']
  #allocation1 [shape = 'u32[144,128]{1,0:T(1,128)}', space=vmem, size = 0x12000, scoped, tag = 'internal scratch']
  %s0 = inlined_call_operand.vmem [shape: f32[2,8,16], index: 0, kind: input, shape index: {}]
  %s1 = inlined_call_operand.vmem [shape: f32[8,1], index: 1, kind: input, shape index: {}]
  %s2 = inlined_call_operand.vmem [shape: f32[8,1], index: 2, kind: input, shape index: {}]
  %s3 = inlined_call_operand.vmem [shape: f32[2,4,16], index: 3, kind: input, shape index: {}]
  %s4 = inlined_call_operand.hbm [shape: f32[2,8,16], index: 4, kind: output, shape index: {}]
  %s5 = sld [smem:[#allocation0]]
  $region49: #{resblock1d_forward.5} parent=0
    _
  %s7 = ssub.s32 1, %s5
  %s8 = scalar_select 0, %s7, %s5
  $region1: #{resblock1d_forward.5} parent=0
    #allocation2 [shape = 'u8[8192]{0}', space=vmem, size = 0x2000, scoped, tag = 'output window, operand 0']
    #allocation3 [shape = 's32[2]{0}', space=sflag, size = 0x8, scoped, tag = 'scoped memory for resblock1d_forward.5']
    %9 = vsyncpa [#allocation3], 0
    %s10 = scalar_lea.sflag [#allocation3], 1
    %11 = vsyncpa %s10, 0
    loop: start=0, step=1, limit=4
    $region2: #{resblock1d_forward.5} parent=1 // loop_pre_header
      _
    $region3: #{resblock1d_forward.5} parent=1 // loop_header
      %s13 = sphi 0, %s17
      %p14 = scmp.ge.s32.totalorder %s13, 4
      %s20 = sphi 0, %s32
      %s21 = sphi 0, %s28
      %s22 = sphi 0, %s20
      %s23 = sphi 0, %s21
      %s24 = sphi 0, %s22
      %s25 = sphi 0, %s23
      %s37 = sphi 0, %s39
      %s40 = sphi 0, %s37
      %s41 = sphi 0, %s40
      %s57 = sphi 0, %s41
      %s61 = sphi 0, %s61
      %s63 = sphi 0, %s61
      %s64 = sphi 0, %s63
      %s78 = sphi 0, %s64
      %s82 = sphi 0, %s82
      %s84 = sphi 0, %s82
      %s85 = sphi 0, %s84
      %s99 = sphi 0, %s85
      %s107 = sphi 0, %s109
      %s110 = sphi 0, %s107
      %s111 = sphi 0, %s110
      %s127 = sphi 0, %s111
      %s135 = sphi 0, %s137
      %s138 = sphi 0, %s135
      %s139 = sphi 0, %s138
      %s155 = sphi 0, %s139
    $region4: #{resblock1d_forward.5} parent=1 // loop_header_branch
      %16 = sbr.rel (%p14) target = $region8
    $region5: #{resblock1d_forward.5} parent=1 // loop_body
      %s18 = ssub.s32 %s13, 1
      %s19 = ssub.s32 %s13, 2
      %s26 = sadd.s32 1, %s21
      %p27 = scmp.ge.s32.totalorder %s26, 1
      %s28 = scalar_select %p27, 0, %s26
      %s29 = sadd.s32 1, %s20
      %s30 = scalar_select %p27, %s29, %s20
      %p31 = scmp.ge.s32.totalorder %s30, 2
      %s32 = scalar_select %p31, 0, %s30
      %s33 = ssub.s32 %s20, %s32
      %s34 = ssub.s32 %s21, %s28
      %s35 = sor.u32 %s33, %s34
      %p36 = scmp.eq.s32.totalorder %s35, 0
      %s38 = sadd.s32 %s37, 1
      %s39 = scalar_select %p36, %s37, %s38
      %p42 = pneg %p36
      %p43 = scmp.eq.s32.totalorder %s13, 1
      %p44 = por %p42, %p43
      %p45 = scmp.ne.s32.totalorder %s37, %s40
      %p46 = scmp.eq.s32.totalorder %s13, 0
      %p47 = por %p45, %p46
      %p48 = scmp.ne.s32.totalorder %s37, %s40
      %p49 = scmp.eq.s32.totalorder %s18, 1
      %p50 = por %p48, %p49
      %p51 = scmp.ne.s32.totalorder %s40, %s41
      %p52 = scmp.eq.s32.totalorder %s18, 0
      %p53 = por %p51, %p52
      %p54 = scmp.ne.s32.totalorder %s40, %s41
      %p55 = scmp.eq.s32.totalorder %s19, 1
      %p56 = por %p54, %p55
      %p58 = scmp.ne.s32.totalorder %s41, %s57
      %p59 = scmp.eq.s32.totalorder %s19, 0
      %p60 = por %p58, %p59
      %s62 = sadd.s32 %s61, 1
      %p65 = scmp.eq.s32.totalorder %s13, 1
      %p66 = scmp.ne.s32.totalorder %s61, %s63
      %p67 = scmp.eq.s32.totalorder %s13, 0
      %p68 = por %p66, %p67
      %p69 = scmp.ne.s32.totalorder %s61, %s63
      %p70 = scmp.eq.s32.totalorder %s18, 1
      %p71 = por %p69, %p70
      %p72 = scmp.ne.s32.totalorder %s63, %s64
      %p73 = scmp.eq.s32.totalorder %s18, 0
      %p74 = por %p72, %p73
      %p75 = scmp.ne.s32.totalorder %s63, %s64
      %p76 = scmp.eq.s32.totalorder %s19, 1
      %p77 = por %p75, %p76
      %p79 = scmp.ne.s32.totalorder %s64, %s78
      %p80 = scmp.eq.s32.totalorder %s19, 0
      %p81 = por %p79, %p80
      %s83 = sadd.s32 %s82, 1
      %p86 = scmp.eq.s32.totalorder %s13, 1
      %p87 = scmp.ne.s32.totalorder %s82, %s84
      %p88 = scmp.eq.s32.totalorder %s13, 0
      %p89 = por %p87, %p88
      %p90 = scmp.ne.s32.totalorder %s82, %s84
      %p91 = scmp.eq.s32.totalorder %s18, 1
      %p92 = por %p90, %p91
      %p93 = scmp.ne.s32.totalorder %s84, %s85
      %p94 = scmp.eq.s32.totalorder %s18, 0
      %p95 = por %p93, %p94
      %p96 = scmp.ne.s32.totalorder %s84, %s85
      %p97 = scmp.eq.s32.totalorder %s19, 1
      %p98 = por %p96, %p97
      %p100 = scmp.ne.s32.totalorder %s85, %s99
      %p101 = scmp.eq.s32.totalorder %s19, 0
      %p102 = por %p100, %p101
      %s103 = ssub.s32 %s20, %s32
      %s104 = ssub.s32 %s21, %s28
      %s105 = sor.u32 %s103, %s104
      %p106 = scmp.eq.s32.totalorder %s105, 0
      %s108 = sadd.s32 %s107, 1
      %s109 = scalar_select %p106, %s107, %s108
      %p112 = pneg %p106
      %p113 = scmp.eq.s32.totalorder %s13, 1
      %p114 = por %p112, %p113
      %p115 = scmp.ne.s32.totalorder %s107, %s110
      %p116 = scmp.eq.s32.totalorder %s13, 0
      %p117 = por %p115, %p116
      %p118 = scmp.ne.s32.totalorder %s107, %s110
      %p119 = scmp.eq.s32.totalorder %s18, 1
      %p120 = por %p118, %p119
      %p121 = scmp.ne.s32.totalorder %s110, %s111
      %p122 = scmp.eq.s32.totalorder %s18, 0
      %p123 = por %p121, %p122
      %p124 = scmp.ne.s32.totalorder %s110, %s111
      %p125 = scmp.eq.s32.totalorder %s19, 1
      %p126 = por %p124, %p125
      %p128 = scmp.ne.s32.totalorder %s111, %s127
      %p129 = scmp.eq.s32.totalorder %s19, 0
      %p130 = por %p128, %p129
      %s131 = ssub.s32 %s20, %s32
      %s132 = ssub.s32 %s21, %s28
      %s133 = sor.u32 %s131, %s132
      %p134 = scmp.eq.s32.totalorder %s133, 0
      %s136 = sadd.s32 %s135, 1
      %s137 = scalar_select %p134, %s135, %s136
      %p140 = pneg %p134
      %p141 = scmp.eq.s32.totalorder %s13, 1
      %p142 = por %p140, %p141
      %p143 = scmp.ne.s32.totalorder %s135, %s138
      %p144 = scmp.eq.s32.totalorder %s13, 0
      %p145 = por %p143, %p144
      %p146 = scmp.ne.s32.totalorder %s135, %s138
      %p147 = scmp.eq.s32.totalorder %s18, 1
      %p148 = por %p146, %p147
      %p149 = scmp.ne.s32.totalorder %s138, %s139
      %p150 = scmp.eq.s32.totalorder %s18, 0
      %p151 = por %p149, %p150
      %p152 = scmp.ne.s32.totalorder %s138, %s139
      %p153 = scmp.eq.s32.totalorder %s19, 1
      %p154 = por %p152, %p153
      %p156 = scmp.ne.s32.totalorder %s139, %s155
      %p157 = scmp.eq.s32.totalorder %s19, 0
      %p158 = por %p156, %p157
      %p159 = scmp.le.s32.totalorder 1, %s13
      %p160 = scmp.lt.s32.totalorder %s13, 3
      %p161 = pnand %p159, %p160
      %p162 = pneg %p161
      // Predicated region
      $region9: #{resblock1d_forward.5} parent=5 // pred_check
        _
      $region10: #{resblock1d_forward.5} parent=5 // pred_check_branch
        %164 = sbr.rel (%p161) target = $region12
      $region11: #{resblock1d_forward.5} parent=5 // pred_region
        %s165 = ssub.s32 %s13, 1
        // Predicated region
        $region13: #{resblock1d_forward.5} parent=11 // pred_check
          %p166 = pneg %p74
        $region14: #{resblock1d_forward.5} parent=11 // pred_check_branch
          %168 = sbr.rel (%p166) target = $region16
        $region15: #{resblock1d_forward.5} parent=11 // pred_region
          _
        $region16: #{resblock1d_forward.5} parent=11 // pred_fallthru
          _
        // Predicated region
        $region17: #{resblock1d_forward.5} parent=11 // pred_check
          %p169 = pneg %p95
        $region18: #{resblock1d_forward.5} parent=11 // pred_check_branch
          %171 = sbr.rel (%p169) target = $region20
        $region19: #{resblock1d_forward.5} parent=11 // pred_region
          _
        $region20: #{resblock1d_forward.5} parent=11 // pred_fallthru
          _
      $region12: #{resblock1d_forward.5} parent=5 // pred_fallthru
        _
      %p172 = scmp.lt.s32.totalorder %s13, 2
      // Predicated region
      $region21: #{resblock1d_forward.5} parent=5 // pred_check
        %p173 = pneg %p172
      $region22: #{resblock1d_forward.5} parent=5 // pred_check_branch
        %175 = sbr.rel (%p173) target = $region24
      $region23: #{resblock1d_forward.5} parent=5 // pred_region
        // Predicated region
        $region25: #{resblock1d_forward.5} parent=23 // pred_check
          %p176 = pneg %p47
        $region26: #{resblock1d_forward.5} parent=23 // pred_check_branch
          %178 = sbr.rel (%p176) target = $region28
        $region27: #{resblock1d_forward.5} parent=23 // pred_region
          %p179 = scmp.lt.s32.totalorder %s20, 1
          %s180 = scalar_select %p179, %s20, 1
          %p181 = scmp.lt.s32.totalorder %s21, 0
          %s182 = scalar_select %p181, %s21, 0
          %s183 = sadd.s32 %s182, %s180
          %s184 = smul.addr %s183, 8
          %s185 = scalar_lea.vmem %s0, %s184
        $region28: #{resblock1d_forward.5} parent=23 // pred_fallthru
          _
        // Predicated region
        $region29: #{resblock1d_forward.5} parent=23 // pred_check
          %p186 = pneg %p117
        $region30: #{resblock1d_forward.5} parent=23 // pred_check_branch
          %188 = sbr.rel (%p186) target = $region32
        $region31: #{resblock1d_forward.5} parent=23 // pred_region
          %p189 = scmp.lt.s32.totalorder %s20, 1
          %s190 = scalar_select %p189, %s20, 1
          %p191 = scmp.lt.s32.totalorder %s21, 0
          %s192 = scalar_select %p191, %s21, 0
          %s193 = sadd.s32 %s192, %s190
          %s194 = smul.addr %s193, 4
          %s195 = scalar_lea.vmem %s3, %s194
        $region32: #{resblock1d_forward.5} parent=23 // pred_fallthru
          _
      $region24: #{resblock1d_forward.5} parent=5 // pred_fallthru
        _
      %p196 = scmp.le.s32.totalorder 1, %s13
      %p197 = scmp.lt.s32.totalorder %s13, 3
      %p198 = pnand %p196, %p197
      %p199 = pneg %p198
      // Predicated region
      $region33: #{resblock1d_forward.5} parent=5 // pred_check
        _
      $region34: #{resblock1d_forward.5} parent=5 // pred_check_branch
        %201 = sbr.rel (%p198) target = $region36
      $region35: #{resblock1d_forward.5} parent=5 // pred_region
        %s202 = ssub.s32 %s13, 1
        %p203 = scmp.lt.s32.totalorder %s22, 1
        %s204 = scalar_select %p203, %s22, 1
        %p205 = scmp.lt.s32.totalorder %s23, 0
        %s206 = scalar_select %p205, %s23, 0
        %s207 = sadd.s32 %s206, %s204
        %s208 = smul.addr %s207, 8
        %s209 = scalar_lea.vmem %s0, %s208
        %p210 = pneg %p53
        %p211 = pneg %p50
        %p212 = pneg %p74
        %p213 = pneg %p71
        %p214 = pneg %p95
        %p215 = pneg %p92
        %p216 = scmp.lt.s32.totalorder %s22, 1
        %s217 = scalar_select %p216, %s22, 1
        %p218 = scmp.lt.s32.totalorder %s23, 0
        %s219 = scalar_select %p218, %s23, 0
        %s220 = sadd.s32 %s219, %s217
        %s221 = smul.addr %s220, 4
        %s222 = scalar_lea.vmem %s3, %s221
        %p223 = pneg %p123
        %p224 = pneg %p120
        %p225 = pneg %p151
        %p226 = pneg %p148
        %s227 = sand.u32 %s138, 1
        %s228 = scalar_lea.sflag [#allocation3], %s227
        %s229 = sand.u32 %s138, 1
        %s230 = smul.addr %s229, 8
        %s231 = scalar_lea.vmem [#allocation2], %s230
        %p232 = scmp.lt.s32.totalorder %s22, 1
        %s233 = scalar_select %p232, %s22, 1
        %p234 = scmp.lt.s32.totalorder %s23, 0
        %s235 = scalar_select %p234, %s23, 0
        %s236 = sadd.s32 %s235, %s233
        %s237 = smul.addr %s236, 8
        %s238 = scalar_lea.vmem %s0, %s237
        %p239 = scmp.lt.s32.totalorder %s22, 1
        %s240 = scalar_select %p239, %s22, 1
        %p241 = scmp.lt.s32.totalorder %s23, 0
        %s242 = scalar_select %p241, %s23, 0
        %s243 = sadd.s32 %s242, %s240
        %s244 = smul.addr %s243, 4
        %s245 = scalar_lea.vmem %s3, %s244
        %v246 = vld [vmem:[%s238] sm:$0xff]
        %v247 = vld [vmem:[%s1] sm:$0xff]
        %249 = vset.pattern.permute.xlu0 0
        %250 = vperm.xlu0 %249, %v247
        %v251 = vpop.permute.xlu0 %250
        %v253 = vmul.f32 %v246, %v251
        %v254 = vld [vmem:[%s2] sm:$0xff]
        %256 = vset.pattern.permute.xlu0 0
        %257 = vperm.xlu0 %256, %v254
        %v258 = vpop.permute.xlu0 %257
        %v260 = vadd.f32 %v253, %v258
        %v261 = vld [vmem:[%s245] sm:$0xf]
        %vm262 = vcmask 1043456
        %v263 = vsel %vm262, %v261, 0.0
        %v264 = vadd.f32 %v260, %v263
        %v265 = vmax.f32 %v264, 0.0
        %vm266 = vcmask 130048
        %267 = vst.msk [vmem:[%s231] sm:$0xff] %vm266, %v265
        %s268 = sand.u32 %s138, 1
        %s269 = scalar_lea.sflag [#allocation3], %s268
        %s270 = sand.u32 %s138, 1
        %s271 = smul.addr %s270, 8
        %s272 = scalar_lea.vmem [#allocation2], %s271
        // Predicated region
        $region37: #{resblock1d_forward.5} parent=35 // pred_check
          %p273 = pneg %p148
        $region38: #{resblock1d_forward.5} parent=35 // pred_check_branch
          %275 = sbr.rel (%p273) target = $region40
        $region39: #{resblock1d_forward.5} parent=35 // pred_region
          %s277 = ssub.s32 128, 128
          %278 = vsyncadd %s269, %s277
          %s279 = sadd.s32 %s23, %s22
          %s280 = smul.addr %s279, 128
          %s281 = scalar_lea.hbm %s4, %s280
          %s283 = sshll.u32 %s272, 4
          %s284 = int_to_ptr.vmem [resolvable:$true] %s283
          %286 = dma.vmem_to_hbm [thread:$0]  %s284, 128, %s281, %s269
        $region40: #{resblock1d_forward.5} parent=35 // pred_fallthru
          _
      $region36: #{resblock1d_forward.5} parent=5 // pred_fallthru
        _
      %p287 = scmp.le.s32.totalorder 2, %s13
      // Predicated region
      $region41: #{resblock1d_forward.5} parent=5 // pred_check
        %p288 = pneg %p287
      $region42: #{resblock1d_forward.5} parent=5 // pred_check_branch
        %290 = sbr.rel (%p288) target = $region44
      $region43: #{resblock1d_forward.5} parent=5 // pred_region
        %s291 = ssub.s32 %s13, 2
        // Predicated region
        $region45: #{resblock1d_forward.5} parent=43 // pred_check
          %p292 = pneg %p154
        $region46: #{resblock1d_forward.5} parent=43 // pred_check_branch
          %294 = sbr.rel (%p292) target = $region48
        $region47: #{resblock1d_forward.5} parent=43 // pred_region
          %s295 = sand.u32 %s139, 1
          %s296 = scalar_lea.sflag [#allocation3], %s295
          %s297 = sand.u32 %s139, 1
          %s298 = smul.addr %s297, 8
          %s299 = scalar_lea.vmem [#allocation2], %s298
          %300 = dma.done %s296, 128
        $region48: #{resblock1d_forward.5} parent=43 // pred_fallthru
          _
      $region44: #{resblock1d_forward.5} parent=5 // pred_fallthru
        _
    $region6: #{resblock1d_forward.5} parent=1 // loop_footer
      %s17 = sadd.s32 1, %s13
    $region7: #{resblock1d_forward.5} parent=1 // loop_footer_branch
      %12 = sbr.rel target = $region3
    $region8: #{resblock1d_forward.5} parent=1 // loop_exit
      _
    %301 = vsyncpa [#allocation3], 1
    %s302 = scalar_lea.sflag [#allocation3], 1
    %303 = vsyncpa %s302, 1

// kernel: resblock1d_forward.3
$region0: #{resblock1d_forward.3}
  #allocation0 [shape = 'u32[]', space=smem, size = 0x4, offset = 0x4, fixed_abs, tag = 'smem constant byte address 0x4 - core index']
  #allocation1 [shape = 'u32[144,128]{1,0:T(1,128)}', space=vmem, size = 0x12000, scoped, tag = 'internal scratch']
  %s0 = inlined_call_operand.vmem [shape: f32[2,4,22], index: 0, kind: input, shape index: {}]
  %s1 = inlined_call_operand.vmem [shape: f32[2,1,4,4], index: 1, kind: input, shape index: {}]
  %s2 = inlined_call_operand.vmem [shape: f32[3,8,4], index: 2, kind: input, shape index: {}]
  %s3 = inlined_call_operand.vmem [shape: f32[2,1,8,2], index: 3, kind: output, shape index: {}]
  %s4 = sld [smem:[#allocation0]]
  $region45: #{resblock1d_forward.3} parent=0
    _
  %s6 = ssub.s32 1, %s4
  %s7 = scalar_select 0, %s6, %s4
  loop: start=0, step=1, limit=4
  $region2: #{resblock1d_forward.3} parent=0 // loop_pre_header
    _
  $region3: #{resblock1d_forward.3} parent=0 // loop_header
    %s9 = sphi 0, %s13
    %p10 = scmp.ge.s32.totalorder %s9, 4
    %s16 = sphi 0, %s28
    %s17 = sphi 0, %s24
    %s18 = sphi 0, %s16
    %s19 = sphi 0, %s17
    %s20 = sphi 0, %s18
    %s21 = sphi 0, %s19
    %s33 = sphi 0, %s35
    %s36 = sphi 0, %s33
    %s37 = sphi 0, %s36
    %s53 = sphi 0, %s37
    %s61 = sphi 0, %s63
    %s64 = sphi 0, %s61
    %s65 = sphi 0, %s64
    %s81 = sphi 0, %s65
    %s85 = sphi 0, %s85
    %s87 = sphi 0, %s85
    %s88 = sphi 0, %s87
    %s102 = sphi 0, %s88
    %s110 = sphi 0, %s112
    %s113 = sphi 0, %s110
    %s114 = sphi 0, %s113
    %s130 = sphi 0, %s114
  $region4: #{resblock1d_forward.3} parent=0 // loop_header_branch
    %12 = sbr.rel (%p10) target = $region8
  $region5: #{resblock1d_forward.3} parent=0 // loop_body
    %s14 = ssub.s32 %s9, 1
    %s15 = ssub.s32 %s9, 2
    %s22 = sadd.s32 1, %s17
    %p23 = scmp.ge.s32.totalorder %s22, 1
    %s24 = scalar_select %p23, 0, %s22
    %s25 = sadd.s32 1, %s16
    %s26 = scalar_select %p23, %s25, %s16
    %p27 = scmp.ge.s32.totalorder %s26, 2
    %s28 = scalar_select %p27, 0, %s26
    %s29 = ssub.s32 %s16, %s28
    %s30 = ssub.s32 %s17, %s24
    %s31 = sor.u32 %s29, %s30
    %p32 = scmp.eq.s32.totalorder %s31, 0
    %s34 = sadd.s32 %s33, 1
    %s35 = scalar_select %p32, %s33, %s34
    %p38 = pneg %p32
    %p39 = scmp.eq.s32.totalorder %s9, 1
    %p40 = por %p38, %p39
    %p41 = scmp.ne.s32.totalorder %s33, %s36
    %p42 = scmp.eq.s32.totalorder %s9, 0
    %p43 = por %p41, %p42
    %p44 = scmp.ne.s32.totalorder %s33, %s36
    %p45 = scmp.eq.s32.totalorder %s14, 1
    %p46 = por %p44, %p45
    %p47 = scmp.ne.s32.totalorder %s36, %s37
    %p48 = scmp.eq.s32.totalorder %s14, 0
    %p49 = por %p47, %p48
    %p50 = scmp.ne.s32.totalorder %s36, %s37
    %p51 = scmp.eq.s32.totalorder %s15, 1
    %p52 = por %p50, %p51
    %p54 = scmp.ne.s32.totalorder %s37, %s53
    %p55 = scmp.eq.s32.totalorder %s15, 0
    %p56 = por %p54, %p55
    %s57 = ssub.s32 %s16, %s28
    %s58 = ssub.s32 %s17, %s24
    %s59 = sor.u32 %s57, %s58
    %p60 = scmp.eq.s32.totalorder %s59, 0
    %s62 = sadd.s32 %s61, 1
    %s63 = scalar_select %p60, %s61, %s62
    %p66 = pneg %p60
    %p67 = scmp.eq.s32.totalorder %s9, 1
    %p68 = por %p66, %p67
    %p69 = scmp.ne.s32.totalorder %s61, %s64
    %p70 = scmp.eq.s32.totalorder %s9, 0
    %p71 = por %p69, %p70
    %p72 = scmp.ne.s32.totalorder %s61, %s64
    %p73 = scmp.eq.s32.totalorder %s14, 1
    %p74 = por %p72, %p73
    %p75 = scmp.ne.s32.totalorder %s64, %s65
    %p76 = scmp.eq.s32.totalorder %s14, 0
    %p77 = por %p75, %p76
    %p78 = scmp.ne.s32.totalorder %s64, %s65
    %p79 = scmp.eq.s32.totalorder %s15, 1
    %p80 = por %p78, %p79
    %p82 = scmp.ne.s32.totalorder %s65, %s81
    %p83 = scmp.eq.s32.totalorder %s15, 0
    %p84 = por %p82, %p83
    %s86 = sadd.s32 %s85, 1
    %p89 = scmp.eq.s32.totalorder %s9, 1
    %p90 = scmp.ne.s32.totalorder %s85, %s87
    %p91 = scmp.eq.s32.totalorder %s9, 0
    %p92 = por %p90, %p91
    %p93 = scmp.ne.s32.totalorder %s85, %s87
    %p94 = scmp.eq.s32.totalorder %s14, 1
    %p95 = por %p93, %p94
    %p96 = scmp.ne.s32.totalorder %s87, %s88
    %p97 = scmp.eq.s32.totalorder %s14, 0
    %p98 = por %p96, %p97
    %p99 = scmp.ne.s32.totalorder %s87, %s88
    %p100 = scmp.eq.s32.totalorder %s15, 1
    %p101 = por %p99, %p100
    %p103 = scmp.ne.s32.totalorder %s88, %s102
    %p104 = scmp.eq.s32.totalorder %s15, 0
    %p105 = por %p103, %p104
    %s106 = ssub.s32 %s16, %s28
    %s107 = ssub.s32 %s17, %s24
    %s108 = sor.u32 %s106, %s107
    %p109 = scmp.eq.s32.totalorder %s108, 0
    %s111 = sadd.s32 %s110, 1
    %s112 = scalar_select %p109, %s110, %s111
    %p115 = pneg %p109
    %p116 = scmp.eq.s32.totalorder %s9, 1
    %p117 = por %p115, %p116
    %p118 = scmp.ne.s32.totalorder %s110, %s113
    %p119 = scmp.eq.s32.totalorder %s9, 0
    %p120 = por %p118, %p119
    %p121 = scmp.ne.s32.totalorder %s110, %s113
    %p122 = scmp.eq.s32.totalorder %s14, 1
    %p123 = por %p121, %p122
    %p124 = scmp.ne.s32.totalorder %s113, %s114
    %p125 = scmp.eq.s32.totalorder %s14, 0
    %p126 = por %p124, %p125
    %p127 = scmp.ne.s32.totalorder %s113, %s114
    %p128 = scmp.eq.s32.totalorder %s15, 1
    %p129 = por %p127, %p128
    %p131 = scmp.ne.s32.totalorder %s114, %s130
    %p132 = scmp.eq.s32.totalorder %s15, 0
    %p133 = por %p131, %p132
    %p134 = scmp.le.s32.totalorder 1, %s9
    %p135 = scmp.lt.s32.totalorder %s9, 3
    %p136 = pnand %p134, %p135
    %p137 = pneg %p136
    // Predicated region
    $region9: #{resblock1d_forward.3} parent=5 // pred_check
      _
    $region10: #{resblock1d_forward.3} parent=5 // pred_check_branch
      %139 = sbr.rel (%p136) target = $region12
    $region11: #{resblock1d_forward.3} parent=5 // pred_region
      %s140 = ssub.s32 %s9, 1
      // Predicated region
      $region13: #{resblock1d_forward.3} parent=11 // pred_check
        %p141 = pneg %p98
      $region14: #{resblock1d_forward.3} parent=11 // pred_check_branch
        %143 = sbr.rel (%p141) target = $region16
      $region15: #{resblock1d_forward.3} parent=11 // pred_region
        _
      $region16: #{resblock1d_forward.3} parent=11 // pred_fallthru
        _
    $region12: #{resblock1d_forward.3} parent=5 // pred_fallthru
      _
    %p144 = scmp.lt.s32.totalorder %s9, 2
    // Predicated region
    $region17: #{resblock1d_forward.3} parent=5 // pred_check
      %p145 = pneg %p144
    $region18: #{resblock1d_forward.3} parent=5 // pred_check_branch
      %147 = sbr.rel (%p145) target = $region20
    $region19: #{resblock1d_forward.3} parent=5 // pred_region
      // Predicated region
      $region21: #{resblock1d_forward.3} parent=19 // pred_check
        %p148 = pneg %p43
      $region22: #{resblock1d_forward.3} parent=19 // pred_check_branch
        %150 = sbr.rel (%p148) target = $region24
      $region23: #{resblock1d_forward.3} parent=19 // pred_region
        %p151 = scmp.lt.s32.totalorder %s16, 1
        %s152 = scalar_select %p151, %s16, 1
        %p153 = scmp.lt.s32.totalorder %s17, 0
        %s154 = scalar_select %p153, %s17, 0
        %s155 = sadd.s32 %s154, %s152
        %s156 = smul.addr %s155, 4
        %s157 = scalar_lea.vmem %s0, %s156
      $region24: #{resblock1d_forward.3} parent=19 // pred_fallthru
        _
      // Predicated region
      $region25: #{resblock1d_forward.3} parent=19 // pred_check
        %p158 = pneg %p71
      $region26: #{resblock1d_forward.3} parent=19 // pred_check_branch
        %160 = sbr.rel (%p158) target = $region28
      $region27: #{resblock1d_forward.3} parent=19 // pred_region
        %p161 = scmp.lt.s32.totalorder %s16, 1
        %s162 = scalar_select %p161, %s16, 1
        %p163 = scmp.lt.s32.totalorder %s17, 0
        %s164 = scalar_select %p163, %s17, 0
        %s165 = sadd.s32 %s164, %s162
        %s166 = smul.addr %s165, 4
        %s167 = scalar_lea.vmem %s1, %s166
      $region28: #{resblock1d_forward.3} parent=19 // pred_fallthru
        _
    $region20: #{resblock1d_forward.3} parent=5 // pred_fallthru
      _
    %p168 = scmp.le.s32.totalorder 1, %s9
    %p169 = scmp.lt.s32.totalorder %s9, 3
    %p170 = pnand %p168, %p169
    %p171 = pneg %p170
    // Predicated region
    $region29: #{resblock1d_forward.3} parent=5 // pred_check
      _
    $region30: #{resblock1d_forward.3} parent=5 // pred_check_branch
      %173 = sbr.rel (%p170) target = $region32
    $region31: #{resblock1d_forward.3} parent=5 // pred_region
      %s174 = ssub.s32 %s9, 1
      %p175 = scmp.lt.s32.totalorder %s18, 1
      %s176 = scalar_select %p175, %s18, 1
      %p177 = scmp.lt.s32.totalorder %s19, 0
      %s178 = scalar_select %p177, %s19, 0
      %s179 = sadd.s32 %s178, %s176
      %s180 = smul.addr %s179, 4
      %s181 = scalar_lea.vmem %s0, %s180
      %p182 = pneg %p49
      %p183 = pneg %p46
      %p184 = scmp.lt.s32.totalorder %s18, 1
      %s185 = scalar_select %p184, %s18, 1
      %p186 = scmp.lt.s32.totalorder %s19, 0
      %s187 = scalar_select %p186, %s19, 0
      %s188 = sadd.s32 %s187, %s185
      %s189 = smul.addr %s188, 4
      %s190 = scalar_lea.vmem %s1, %s189
      %p191 = pneg %p77
      %p192 = pneg %p74
      %p193 = pneg %p98
      %p194 = pneg %p95
      %p195 = pneg %p126
      %p196 = pneg %p123
      %p197 = scmp.lt.s32.totalorder %s18, 1
      %s198 = scalar_select %p197, %s18, 1
      %p199 = scmp.lt.s32.totalorder %s19, 0
      %s200 = scalar_select %p199, %s19, 0
      %s201 = sadd.s32 %s200, %s198
      %s202 = smul.addr %s201, 8
      %s203 = scalar_lea.vmem %s3, %s202
      %p204 = scmp.lt.s32.totalorder %s18, 1
      %s205 = scalar_select %p204, %s18, 1
      %p206 = scmp.lt.s32.totalorder %s19, 0
      %s207 = scalar_select %p206, %s19, 0
      %s208 = sadd.s32 %s207, %s205
      %s209 = smul.addr %s208, 4
      %s210 = scalar_lea.vmem %s0, %s209
      %p211 = scmp.lt.s32.totalorder %s18, 1
      %s212 = scalar_select %p211, %s18, 1
      %p213 = scmp.lt.s32.totalorder %s19, 0
      %s214 = scalar_select %p213, %s19, 0
      %s215 = sadd.s32 %s214, %s212
      %s216 = smul.addr %s215, 4
      %s217 = scalar_lea.vmem %s1, %s216
      %p218 = scmp.lt.s32.totalorder %s18, 1
      %s219 = scalar_select %p218, %s18, 1
      %p220 = scmp.lt.s32.totalorder %s19, 0
      %s221 = scalar_select %p220, %s19, 0
      %s222 = sadd.s32 %s221, %s219
      %s223 = smul.addr %s222, 8
      %s224 = scalar_lea.vmem %s3, %s223
      %v225 = vld [vmem:[%s210] sm:$0xf]
      %v226 = vld [vmem:[%s217] sm:$0xf]
      %228 = vrot.lane.b32.xlu0 %v226, 22
      %v229 = vpop.permute.xlu0 %228
      %vm231 = vcmask 179200
      %v232 = vsel %vm231, %v225, %v229
      %v233 = vld [vmem:[%s2] sm:$0xff]
      %s234 = scalar_lea.vmem %s2, 8
      %v235 = vld [vmem:[%s234] sm:$0xff]
      %237 = vrot.lane.b32.xlu0 %v232, 126
      %v238 = vpop.permute.xlu0 %237
      %vm239 = vcmask 31744
      %v241 = vsel %vm239, %v235, 0
      %vm243 = vcmask 1043456
      %v244 = vsel %vm243, %v238, 0
      %246 = vmatprep.subr.mxu0 0.0
      %247 = vmatpush1.msra.mxu0 %v244
      %248 = vmatprep.subr.mxu0 0.0
      %249 = vmatpush1.msra.mxu0 0.0
      %250 = vmatprep.subr.mxu0 0.0
      %251 = vmatpush1.msra.mxu0 0.0
      %252 = vmatprep.subr.mxu0 0.0
      %253 = vmatpush1.msra.mxu0 0.0
      %254 = vmatprep.subr.mxu0 0.0
      %255 = vmatpush1.msra.mxu0 0.0
      %256 = vmatprep.subr.mxu0 0.0
      %257 = vmatpush1.msra.mxu0 0.0
      %258 = vmatprep.subr.mxu0 0.0
      %259 = vmatpush1.msra.mxu0 0.0
      %260 = vmatprep.subr.mxu0 0.0
      %261 = vmatpush1.msra.mxu0 0.0
      %262 = vmatprep.subr.mxu0 0.0
      %263 = vmatpush1.msra.mxu0 0.0
      %264 = vmatprep.subr.mxu0 0.0
      %265 = vmatpush1.msra.mxu0 0.0
      %266 = vmatprep.subr.mxu0 0.0
      %267 = vmatpush1.msra.mxu0 0.0
      %268 = vmatprep.subr.mxu0 0.0
      %269 = vmatpush1.msra.mxu0 0.0
      %270 = vmatprep.subr.mxu0 0.0
      %271 = vmatpush1.msra.mxu0 0.0
      %272 = vmatprep.subr.mxu0 0.0
      %273 = vmatpush1.msra.mxu0 0.0
      %274 = vmatprep.subr.mxu0 0.0
      %275 = vmatpush1.msra.mxu0 0.0
      %276 = vmatprep.subr.mxu0 0.0
      %277 = vmatpush1.msra.mxu0 0.0
      %278 = vmatprep.subr.mxu0 0.0
      %279 = vmatpush1.msra.mxu0 0.0
      %280 = vmatprep.subr.mxu0 0.0
      %281 = vmatpush1.msra.mxu0 0.0
      %282 = vmatprep.subr.mxu0 0.0
      %283 = vmatpush1.msra.mxu0 0.0
      %284 = vmatprep.subr.mxu0 0.0
      %285 = vmatpush1.msra.mxu0 0.0
      %286 = vmatprep.subr.mxu0 0.0
      %287 = vmatpush1.msra.mxu0 0.0
      %288 = vmatprep.subr.mxu0 0.0
      %289 = vmatpush1.msra.mxu0 0.0
      %290 = vmatprep.subr.mxu0 0.0
      %291 = vmatpush1.msra.mxu0 0.0
      %292 = vmatprep.subr.mxu0 0.0
      %293 = vmatpush1.msra.mxu0 0.0
      %294 = vmatprep.subr.mxu0 0.0
      %295 = vmatpush1.msra.mxu0 0.0
      %296 = vmatprep.subr.mxu0 0.0
      %297 = vmatpush1.msra.mxu0 0.0
      %298 = vmatprep.subr.mxu0 0.0
      %299 = vmatpush1.msra.mxu0 0.0
      %300 = vmatprep.subr.mxu0 0.0
      %301 = vmatpush1.msra.mxu0 0.0
      %302 = vmatprep.subr.mxu0 0.0
      %303 = vmatpush1.msra.mxu0 0.0
      %304 = vmatprep.subr.mxu0 0.0
      %305 = vmatpush1.msra.mxu0 0.0
      %306 = vmatprep.subr.mxu0 0.0
      %307 = vmatpush1.msra.mxu0 0.0
      %308 = vmatprep.subr.mxu0 0.0
      %309 = vmatpush1.msra.mxu0 0.0
      %310 = vmatprep.mubr.f32.mxu0 0.0
      %311 = vmatmul.mubr.f32.gmra.mrb[0].mxu0 %v241
      %v312 = vpop.f32.mrb[0].mxu0
      %v313 = vadd.f32 0.0, %v312
      %v314 = vpop.f32.mrb[0].mxu0
      %315 = vdwg.mxu0
      %316 = vrot.lane.b32.xlu0 %v232, 127
      %v317 = vpop.permute.xlu0 %316
      %v319 = vsel %vm239, %v233, 0
      %v321 = vsel %vm243, %v317, 0
      %323 = vmatprep.subr.mxu0 0.0
      %324 = vmatpush1.msra.mxu0 %v321
      %325 = vmatprep.subr.mxu0 0.0
      %326 = vmatpush1.msra.mxu0 0.0
      %327 = vmatprep.subr.mxu0 0.0
      %328 = vmatpush1.msra.mxu0 0.0
      %329 = vmatprep.subr.mxu0 0.0
      %330 = vmatpush1.msra.mxu0 0.0
      %331 = vmatprep.subr.mxu0 0.0
      %332 = vmatpush1.msra.mxu0 0.0
      %333 = vmatprep.subr.mxu0 0.0
      %334 = vmatpush1.msra.mxu0 0.0
      %335 = vmatprep.subr.mxu0 0.0
      %336 = vmatpush1.msra.mxu0 0.0
      %337 = vmatprep.subr.mxu0 0.0
      %338 = vmatpush1.msra.mxu0 0.0
      %339 = vmatprep.subr.mxu0 0.0
      %340 = vmatpush1.msra.mxu0 0.0
      %341 = vmatprep.subr.mxu0 0.0
      %342 = vmatpush1.msra.mxu0 0.0
      %343 = vmatprep.subr.mxu0 0.0
      %344 = vmatpush1.msra.mxu0 0.0
      %345 = vmatprep.subr.mxu0 0.0
      %346 = vmatpush1.msra.mxu0 0.0
      %347 = vmatprep.subr.mxu0 0.0
      %348 = vmatpush1.msra.mxu0 0.0
      %349 = vmatprep.subr.mxu0 0.0
      %350 = vmatpush1.msra.mxu0 0.0
      %351 = vmatprep.subr.mxu0 0.0
      %352 = vmatpush1.msra.mxu0 0.0
      %353 = vmatprep.subr.mxu0 0.0
      %354 = vmatpush1.msra.mxu0 0.0
      %355 = vmatprep.subr.mxu0 0.0
      %356 = vmatpush1.msra.mxu0 0.0
      %357 = vmatprep.subr.mxu0 0.0
      %358 = vmatpush1.msra.mxu0 0.0
      %359 = vmatprep.subr.mxu0 0.0
      %360 = vmatpush1.msra.mxu0 0.0
      %361 = vmatprep.subr.mxu0 0.0
      %362 = vmatpush1.msra.mxu0 0.0
      %363 = vmatprep.subr.mxu0 0.0
      %364 = vmatpush1.msra.mxu0 0.0
      %365 = vmatprep.subr.mxu0 0.0
      %366 = vmatpush1.msra.mxu0 0.0
      %367 = vmatprep.subr.mxu0 0.0
      %368 = vmatpush1.msra.mxu0 0.0
      %369 = vmatprep.subr.mxu0 0.0
      %370 = vmatpush1.msra.mxu0 0.0
      %371 = vmatprep.subr.mxu0 0.0
      %372 = vmatpush1.msra.mxu0 0.0
      %373 = vmatprep.subr.mxu0 0.0
      %374 = vmatpush1.msra.mxu0 0.0
      %375 = vmatprep.subr.mxu0 0.0
      %376 = vmatpush1.msra.mxu0 0.0
      %377 = vmatprep.subr.mxu0 0.0
      %378 = vmatpush1.msra.mxu0 0.0
      %379 = vmatprep.subr.mxu0 0.0
      %380 = vmatpush1.msra.mxu0 0.0
      %381 = vmatprep.subr.mxu0 0.0
      %382 = vmatpush1.msra.mxu0 0.0
      %383 = vmatprep.subr.mxu0 0.0
      %384 = vmatpush1.msra.mxu0 0.0
      %385 = vmatprep.subr.mxu0 0.0
      %386 = vmatpush1.msra.mxu0 0.0
      %387 = vmatprep.mubr.f32.mxu0 0.0
      %388 = vmatmul.mubr.f32.gmra.mrb[0].mxu0 %v319
      %v389 = vpop.f32.mrb[0].mxu0
      %v390 = vadd.f32 %v313, %v389
      %v391 = vpop.f32.mrb[0].mxu0
      %392 = vdwg.mxu0
      %s393 = scalar_lea.vmem %s2, 16
      %v394 = vld [vmem:[%s393] sm:$0xff]
      %395 = vrot.lane.b32.xlu0 %v232, 125
      %v396 = vpop.permute.xlu0 %395
      %v398 = vsel %vm239, %v394, 0
      %v400 = vsel %vm243, %v396, 0
      %402 = vmatprep.subr.mxu0 0.0
      %403 = vmatpush1.msra.mxu0 %v400
      %404 = vmatprep.subr.mxu0 0.0
      %405 = vmatpush1.msra.mxu0 0.0
      %406 = vmatprep.subr.mxu0 0.0
      %407 = vmatpush1.msra.mxu0 0.0
      %408 = vmatprep.subr.mxu0 0.0
      %409 = vmatpush1.msra.mxu0 0.0
      %410 = vmatprep.subr.mxu0 0.0
      %411 = vmatpush1.msra.mxu0 0.0
      %412 = vmatprep.subr.mxu0 0.0
      %413 = vmatpush1.msra.mxu0 0.0
      %414 = vmatprep.subr.mxu0 0.0
      %415 = vmatpush1.msra.mxu0 0.0
      %416 = vmatprep.subr.mxu0 0.0
      %417 = vmatpush1.msra.mxu0 0.0
      %418 = vmatprep.subr.mxu0 0.0
      %419 = vmatpush1.msra.mxu0 0.0
      %420 = vmatprep.subr.mxu0 0.0
      %421 = vmatpush1.msra.mxu0 0.0
      %422 = vmatprep.subr.mxu0 0.0
      %423 = vmatpush1.msra.mxu0 0.0
      %424 = vmatprep.subr.mxu0 0.0
      %425 = vmatpush1.msra.mxu0 0.0
      %426 = vmatprep.subr.mxu0 0.0
      %427 = vmatpush1.msra.mxu0 0.0
      %428 = vmatprep.subr.mxu0 0.0
      %429 = vmatpush1.msra.mxu0 0.0
      %430 = vmatprep.subr.mxu0 0.0
      %431 = vmatpush1.msra.mxu0 0.0
      %432 = vmatprep.subr.mxu0 0.0
      %433 = vmatpush1.msra.mxu0 0.0
      %434 = vmatprep.subr.mxu0 0.0
      %435 = vmatpush1.msra.mxu0 0.0
      %436 = vmatprep.subr.mxu0 0.0
      %437 = vmatpush1.msra.mxu0 0.0
      %438 = vmatprep.subr.mxu0 0.0
      %439 = vmatpush1.msra.mxu0 0.0
      %440 = vmatprep.subr.mxu0 0.0
      %441 = vmatpush1.msra.mxu0 0.0
      %442 = vmatprep.subr.mxu0 0.0
      %443 = vmatpush1.msra.mxu0 0.0
      %444 = vmatprep.subr.mxu0 0.0
      %445 = vmatpush1.msra.mxu0 0.0
      %446 = vmatprep.subr.mxu0 0.0
      %447 = vmatpush1.msra.mxu0 0.0
      %448 = vmatprep.subr.mxu0 0.0
      %449 = vmatpush1.msra.mxu0 0.0
      %450 = vmatprep.subr.mxu0 0.0
      %451 = vmatpush1.msra.mxu0 0.0
      %452 = vmatprep.subr.mxu0 0.0
      %453 = vmatpush1.msra.mxu0 0.0
      %454 = vmatprep.subr.mxu0 0.0
      %455 = vmatpush1.msra.mxu0 0.0
      %456 = vmatprep.subr.mxu0 0.0
      %457 = vmatpush1.msra.mxu0 0.0
      %458 = vmatprep.subr.mxu0 0.0
      %459 = vmatpush1.msra.mxu0 0.0
      %460 = vmatprep.subr.mxu0 0.0
      %461 = vmatpush1.msra.mxu0 0.0
      %462 = vmatprep.subr.mxu0 0.0
      %463 = vmatpush1.msra.mxu0 0.0
      %464 = vmatprep.subr.mxu0 0.0
      %465 = vmatpush1.msra.mxu0 0.0
      %466 = vmatprep.mubr.f32.mxu0 0.0
      %467 = vmatmul.mubr.f32.gmra.mrb[0].mxu0 %v398
      %v468 = vpop.f32.mrb[0].mxu0
      %v469 = vadd.f32 0.0, %v468
      %v470 = vpop.f32.mrb[0].mxu0
      %471 = vdwg.mxu0
      %v472 = vadd.f32 %v390, %v469
      %vm473 = vcmask 130048
      %v474 = vsel %vm473, %v472, 0.0
      %475 = vadd.xlane.f32.xlu0 %v474
      %v476 = vpop.xlane.xlu0 %475
      %v477 = vmul.f32 %v472, %v472
      %v478 = vsel %vm473, %v477, 0.0
      %479 = vadd.xlane.f32.xlu0 %v478
      %v480 = vpop.xlane.xlu0 %479
      %vm481 = vcmask 7168
      %v482 = vsel %vm481, %v476, %v480
      %vm483 = vcmask 15360
      %484 = vst.msk [vmem:[%s224] sm:$0xff] %vm483, %v482
      %p485 = scmp.lt.s32.totalorder %s18, 1
      %s486 = scalar_select %p485, %s18, 1
      %p487 = scmp.lt.s32.totalorder %s19, 0
      %s488 = scalar_select %p487, %s19, 0
      %s489 = sadd.s32 %s488, %s486
      %s490 = smul.addr %s489, 8
      %s491 = scalar_lea.vmem %s3, %s490
      // Predicated region
      $region33: #{resblock1d_forward.3} parent=31 // pred_check
        %p492 = pneg %p123
      $region34: #{resblock1d_forward.3} parent=31 // pred_check_branch
        %494 = sbr.rel (%p492) target = $region36
      $region35: #{resblock1d_forward.3} parent=31 // pred_region
        _
      $region36: #{resblock1d_forward.3} parent=31 // pred_fallthru
        _
    $region32: #{resblock1d_forward.3} parent=5 // pred_fallthru
      _
    %p495 = scmp.le.s32.totalorder 2, %s9
    // Predicated region
    $region37: #{resblock1d_forward.3} parent=5 // pred_check
      %p496 = pneg %p495
    $region38: #{resblock1d_forward.3} parent=5 // pred_check_branch
      %498 = sbr.rel (%p496) target = $region40
    $region39: #{resblock1d_forward.3} parent=5 // pred_region
      %s499 = ssub.s32 %s9, 2
      // Predicated region
      $region41: #{resblock1d_forward.3} parent=39 // pred_check
        %p500 = pneg %p129
      $region42: #{resblock1d_forward.3} parent=39 // pred_check_branch
        %502 = sbr.rel (%p500) target = $region44
      $region43: #{resblock1d_forward.3} parent=39 // pred_region
        %p503 = scmp.lt.s32.totalorder %s20, 1
        %s504 = scalar_select %p503, %s20, 1
        %p505 = scmp.lt.s32.totalorder %s21, 0
        %s506 = scalar_select %p505, %s21, 0
        %s507 = sadd.s32 %s506, %s504
        %s508 = smul.addr %s507, 8
        %s509 = scalar_lea.vmem %s3, %s508
      $region44: #{resblock1d_forward.3} parent=39 // pred_fallthru
        _
    $region40: #{resblock1d_forward.3} parent=5 // pred_fallthru
      _
  $region6: #{resblock1d_forward.3} parent=0 // loop_footer
    %s13 = sadd.s32 1, %s9
  $region7: #{resblock1d_forward.3} parent=0 // loop_footer_branch
    %8 = sbr.rel target = $region3
  $region8: #{resblock1d_forward.3} parent=0 // loop_exit
    _

// kernel: resblock1d_forward.4
$region0: #{resblock1d_forward.4}
  #allocation0 [shape = 'u32[]', space=smem, size = 0x4, offset = 0x4, fixed_abs, tag = 'smem constant byte address 0x4 - core index']
  #allocation1 [shape = 'u32[144,128]{1,0:T(1,128)}', space=vmem, size = 0x12000, scoped, tag = 'internal scratch']
  %s0 = inlined_call_operand.vmem [shape: f32[2,4,22], index: 0, kind: input, shape index: {}]
  %s1 = inlined_call_operand.vmem [shape: f32[2,1,4,4], index: 1, kind: input, shape index: {}]
  %s2 = inlined_call_operand.vmem [shape: f32[3,8,4], index: 2, kind: input, shape index: {}]
  %s3 = inlined_call_operand.vmem [shape: f32[3,8,8], index: 3, kind: input, shape index: {}]
  %s4 = inlined_call_operand.vmem [shape: f32[8,1], index: 4, kind: input, shape index: {}]
  %s5 = inlined_call_operand.vmem [shape: f32[8,1], index: 5, kind: input, shape index: {}]
  %s6 = inlined_call_operand.vmem [shape: f32[2,8,16], index: 6, kind: output, shape index: {0}]
  %s7 = inlined_call_operand.vmem [shape: f32[2,1,8,2], index: 7, kind: output, shape index: {1}]
  %8 = xla_tuple %s6, %s7
  %s9 = sld [smem:[#allocation0]]
  $region65: #{resblock1d_forward.4} parent=0
    _
  %s11 = ssub.s32 1, %s9
  %s12 = scalar_select 0, %s11, %s9
  loop: start=0, step=1, limit=4
  $region2: #{resblock1d_forward.4} parent=0 // loop_pre_header
    _
  $region3: #{resblock1d_forward.4} parent=0 // loop_header
    %s14 = sphi 0, %s18
    %p15 = scmp.ge.s32.totalorder %s14, 4
    %s21 = sphi 0, %s33
    %s22 = sphi 0, %s29
    %s23 = sphi 0, %s21
    %s24 = sphi 0, %s22
    %s25 = sphi 0, %s23
    %s26 = sphi 0, %s24
    %s38 = sphi 0, %s40
    %s41 = sphi 0, %s38
    %s42 = sphi 0, %s41
    %s58 = sphi 0, %s42
    %s66 = sphi 0, %s68
    %s69 = sphi 0, %s66
    %s70 = sphi 0, %s69
    %s86 = sphi 0, %s70
    %s90 = sphi 0, %s90
    %s92 = sphi 0, %s90
    %s93 = sphi 0, %s92
    %s107 = sphi 0, %s93
    %s111 = sphi 0, %s111
    %s113 = sphi 0, %s111
    %s114 = sphi 0, %s113
    %s128 = sphi 0, %s114
    %s132 = sphi 0, %s132
    %s134 = sphi 0, %s132
    %s135 = sphi 0, %s134
    %s149 = sphi 0, %s135
    %s153 = sphi 0, %s153
    %s155 = sphi 0, %s153
    %s156 = sphi 0, %s155
    %s170 = sphi 0, %s156
    %s178 = sphi 0, %s180
    %s181 = sphi 0, %s178
    %s182 = sphi 0, %s181
    %s198 = sphi 0, %s182
    %s206 = sphi 0, %s208
    %s209 = sphi 0, %s206
    %s210 = sphi 0, %s209
    %s226 = sphi 0, %s210
  $region4: #{resblock1d_forward.4} parent=0 // loop_header_branch
    %17 = sbr.rel (%p15) target = $region8
  $region5: #{resblock1d_forward.4} parent=0 // loop_body
    %s19 = ssub.s32 %s14, 1
    %s20 = ssub.s32 %s14, 2
    %s27 = sadd.s32 1, %s22
    %p28 = scmp.ge.s32.totalorder %s27, 1
    %s29 = scalar_select %p28, 0, %s27
    %s30 = sadd.s32 1, %s21
    %s31 = scalar_select %p28, %s30, %s21
    %p32 = scmp.ge.s32.totalorder %s31, 2
    %s33 = scalar_select %p32, 0, %s31
    %s34 = ssub.s32 %s21, %s33
    %s35 = ssub.s32 %s22, %s29
    %s36 = sor.u32 %s34, %s35
    %p37 = scmp.eq.s32.totalorder %s36, 0
    %s39 = sadd.s32 %s38, 1
    %s40 = scalar_select %p37, %s38, %s39
    %p43 = pneg %p37
    %p44 = scmp.eq.s32.totalorder %s14, 1
    %p45 = por %p43, %p44
    %p46 = scmp.ne.s32.totalorder %s38, %s41
    %p47 = scmp.eq.s32.totalorder %s14, 0
    %p48 = por %p46, %p47
    %p49 = scmp.ne.s32.totalorder %s38, %s41
    %p50 = scmp.eq.s32.totalorder %s19, 1
    %p51 = por %p49, %p50
    %p52 = scmp.ne.s32.totalorder %s41, %s42
    %p53 = scmp.eq.s32.totalorder %s19, 0
    %p54 = por %p52, %p53
    %p55 = scmp.ne.s32.totalorder %s41, %s42
    %p56 = scmp.eq.s32.totalorder %s20, 1
    %p57 = por %p55, %p56
    %p59 = scmp.ne.s32.totalorder %s42, %s58
    %p60 = scmp.eq.s32.totalorder %s20, 0
    %p61 = por %p59, %p60
    %s62 = ssub.s32 %s21, %s33
    %s63 = ssub.s32 %s22, %s29
    %s64 = sor.u32 %s62, %s63
    %p65 = scmp.eq.s32.totalorder %s64, 0
    %s67 = sadd.s32 %s66, 1
    %s68 = scalar_select %p65, %s66, %s67
    %p71 = pneg %p65
    %p72 = scmp.eq.s32.totalorder %s14, 1
    %p73 = por %p71, %p72
    %p74 = scmp.ne.s32.totalorder %s66, %s69
    %p75 = scmp.eq.s32.totalorder %s14, 0
    %p76 = por %p74, %p75
    %p77 = scmp.ne.s32.totalorder %s66, %s69
    %p78 = scmp.eq.s32.totalorder %s19, 1
    %p79 = por %p77, %p78
    %p80 = scmp.ne.s32.totalorder %s69, %s70
    %p81 = scmp.eq.s32.totalorder %s19, 0
    %p82 = por %p80, %p81
    %p83 = scmp.ne.s32.totalorder %s69, %s70
    %p84 = scmp.eq.s32.totalorder %s20, 1
    %p85 = por %p83, %p84
    %p87 = scmp.ne.s32.totalorder %s70, %s86
    %p88 = scmp.eq.s32.totalorder %s20, 0
    %p89 = por %p87, %p88
    %s91 = sadd.s32 %s90, 1
    %p94 = scmp.eq.s32.totalorder %s14, 1
    %p95 = scmp.ne.s32.totalorder %s90, %s92
    %p96 = scmp.eq.s32.totalorder %s14, 0
    %p97 = por %p95, %p96
    %p98 = scmp.ne.s32.totalorder %s90, %s92
    %p99 = scmp.eq.s32.totalorder %s19, 1
    %p100 = por %p98, %p99
    %p101 = scmp.ne.s32.totalorder %s92, %s93
    %p102 = scmp.eq.s32.totalorder %s19, 0
    %p103 = por %p101, %p102
    %p104 = scmp.ne.s32.totalorder %s92, %s93
    %p105 = scmp.eq.s32.totalorder %s20, 1
    %p106 = por %p104, %p105
    %p108 = scmp.ne.s32.totalorder %s93, %s107
    %p109 = scmp.eq.s32.totalorder %s20, 0
    %p110 = por %p108, %p109
    %s112 = sadd.s32 %s111, 1
    %p115 = scmp.eq.s32.totalorder %s14, 1
    %p116 = scmp.ne.s32.totalorder %s111, %s113
    %p117 = scmp.eq.s32.totalorder %s14, 0
    %p118 = por %p116, %p117
    %p119 = scmp.ne.s32.totalorder %s111, %s113
    %p120 = scmp.eq.s32.totalorder %s19, 1
    %p121 = por %p119, %p120
    %p122 = scmp.ne.s32.totalorder %s113, %s114
    %p123 = scmp.eq.s32.totalorder %s19, 0
    %p124 = por %p122, %p123
    %p125 = scmp.ne.s32.totalorder %s113, %s114
    %p126 = scmp.eq.s32.totalorder %s20, 1
    %p127 = por %p125, %p126
    %p129 = scmp.ne.s32.totalorder %s114, %s128
    %p130 = scmp.eq.s32.totalorder %s20, 0
    %p131 = por %p129, %p130
    %s133 = sadd.s32 %s132, 1
    %p136 = scmp.eq.s32.totalorder %s14, 1
    %p137 = scmp.ne.s32.totalorder %s132, %s134
    %p138 = scmp.eq.s32.totalorder %s14, 0
    %p139 = por %p137, %p138
    %p140 = scmp.ne.s32.totalorder %s132, %s134
    %p141 = scmp.eq.s32.totalorder %s19, 1
    %p142 = por %p140, %p141
    %p143 = scmp.ne.s32.totalorder %s134, %s135
    %p144 = scmp.eq.s32.totalorder %s19, 0
    %p145 = por %p143, %p144
    %p146 = scmp.ne.s32.totalorder %s134, %s135
    %p147 = scmp.eq.s32.totalorder %s20, 1
    %p148 = por %p146, %p147
    %p150 = scmp.ne.s32.totalorder %s135, %s149
    %p151 = scmp.eq.s32.totalorder %s20, 0
    %p152 = por %p150, %p151
    %s154 = sadd.s32 %s153, 1
    %p157 = scmp.eq.s32.totalorder %s14, 1
    %p158 = scmp.ne.s32.totalorder %s153, %s155
    %p159 = scmp.eq.s32.totalorder %s14, 0
    %p160 = por %p158, %p159
    %p161 = scmp.ne.s32.totalorder %s153, %s155
    %p162 = scmp.eq.s32.totalorder %s19, 1
    %p163 = por %p161, %p162
    %p164 = scmp.ne.s32.totalorder %s155, %s156
    %p165 = scmp.eq.s32.totalorder %s19, 0
    %p166 = por %p164, %p165
    %p167 = scmp.ne.s32.totalorder %s155, %s156
    %p168 = scmp.eq.s32.totalorder %s20, 1
    %p169 = por %p167, %p168
    %p171 = scmp.ne.s32.totalorder %s156, %s170
    %p172 = scmp.eq.s32.totalorder %s20, 0
    %p173 = por %p171, %p172
    %s174 = ssub.s32 %s21, %s33
    %s175 = ssub.s32 %s22, %s29
    %s176 = sor.u32 %s174, %s175
    %p177 = scmp.eq.s32.totalorder %s176, 0
    %s179 = sadd.s32 %s178, 1
    %s180 = scalar_select %p177, %s178, %s179
    %p183 = pneg %p177
    %p184 = scmp.eq.s32.totalorder %s14, 1
    %p185 = por %p183, %p184
    %p186 = scmp.ne.s32.totalorder %s178, %s181
    %p187 = scmp.eq.s32.totalorder %s14, 0
    %p188 = por %p186, %p187
    %p189 = scmp.ne.s32.totalorder %s178, %s181
    %p190 = scmp.eq.s32.totalorder %s19, 1
    %p191 = por %p189, %p190
    %p192 = scmp.ne.s32.totalorder %s181, %s182
    %p193 = scmp.eq.s32.totalorder %s19, 0
    %p194 = por %p192, %p193
    %p195 = scmp.ne.s32.totalorder %s181, %s182
    %p196 = scmp.eq.s32.totalorder %s20, 1
    %p197 = por %p195, %p196
    %p199 = scmp.ne.s32.totalorder %s182, %s198
    %p200 = scmp.eq.s32.totalorder %s20, 0
    %p201 = por %p199, %p200
    %s202 = ssub.s32 %s21, %s33
    %s203 = ssub.s32 %s22, %s29
    %s204 = sor.u32 %s202, %s203
    %p205 = scmp.eq.s32.totalorder %s204, 0
    %s207 = sadd.s32 %s206, 1
    %s208 = scalar_select %p205, %s206, %s207
    %p211 = pneg %p205
    %p212 = scmp.eq.s32.totalorder %s14, 1
    %p213 = por %p211, %p212
    %p214 = scmp.ne.s32.totalorder %s206, %s209
    %p215 = scmp.eq.s32.totalorder %s14, 0
    %p216 = por %p214, %p215
    %p217 = scmp.ne.s32.totalorder %s206, %s209
    %p218 = scmp.eq.s32.totalorder %s19, 1
    %p219 = por %p217, %p218
    %p220 = scmp.ne.s32.totalorder %s209, %s210
    %p221 = scmp.eq.s32.totalorder %s19, 0
    %p222 = por %p220, %p221
    %p223 = scmp.ne.s32.totalorder %s209, %s210
    %p224 = scmp.eq.s32.totalorder %s20, 1
    %p225 = por %p223, %p224
    %p227 = scmp.ne.s32.totalorder %s210, %s226
    %p228 = scmp.eq.s32.totalorder %s20, 0
    %p229 = por %p227, %p228
    %p230 = scmp.le.s32.totalorder 1, %s14
    %p231 = scmp.lt.s32.totalorder %s14, 3
    %p232 = pnand %p230, %p231
    %p233 = pneg %p232
    // Predicated region
    $region9: #{resblock1d_forward.4} parent=5 // pred_check
      _
    $region10: #{resblock1d_forward.4} parent=5 // pred_check_branch
      %235 = sbr.rel (%p232) target = $region12
    $region11: #{resblock1d_forward.4} parent=5 // pred_region
      %s236 = ssub.s32 %s14, 1
      // Predicated region
      $region13: #{resblock1d_forward.4} parent=11 // pred_check
        %p237 = pneg %p103
      $region14: #{resblock1d_forward.4} parent=11 // pred_check_branch
        %239 = sbr.rel (%p237) target = $region16
      $region15: #{resblock1d_forward.4} parent=11 // pred_region
        _
      $region16: #{resblock1d_forward.4} parent=11 // pred_fallthru
        _
      // Predicated region
      $region17: #{resblock1d_forward.4} parent=11 // pred_check
        %p240 = pneg %p124
      $region18: #{resblock1d_forward.4} parent=11 // pred_check_branch
        %242 = sbr.rel (%p240) target = $region20
      $region19: #{resblock1d_forward.4} parent=11 // pred_region
        _
      $region20: #{resblock1d_forward.4} parent=11 // pred_fallthru
        _
      // Predicated region
      $region21: #{resblock1d_forward.4} parent=11 // pred_check
        %p243 = pneg %p145
      $region22: #{resblock1d_forward.4} parent=11 // pred_check_branch
        %245 = sbr.rel (%p243) target = $region24
      $region23: #{resblock1d_forward.4} parent=11 // pred_region
        _
      $region24: #{resblock1d_forward.4} parent=11 // pred_fallthru
        _
      // Predicated region
      $region25: #{resblock1d_forward.4} parent=11 // pred_check
        %p246 = pneg %p166
      $region26: #{resblock1d_forward.4} parent=11 // pred_check_branch
        %248 = sbr.rel (%p246) target = $region28
      $region27: #{resblock1d_forward.4} parent=11 // pred_region
        _
      $region28: #{resblock1d_forward.4} parent=11 // pred_fallthru
        _
    $region12: #{resblock1d_forward.4} parent=5 // pred_fallthru
      _
    %p249 = scmp.lt.s32.totalorder %s14, 2
    // Predicated region
    $region29: #{resblock1d_forward.4} parent=5 // pred_check
      %p250 = pneg %p249
    $region30: #{resblock1d_forward.4} parent=5 // pred_check_branch
      %252 = sbr.rel (%p250) target = $region32
    $region31: #{resblock1d_forward.4} parent=5 // pred_region
      // Predicated region
      $region33: #{resblock1d_forward.4} parent=31 // pred_check
        %p253 = pneg %p48
      $region34: #{resblock1d_forward.4} parent=31 // pred_check_branch
        %255 = sbr.rel (%p253) target = $region36
      $region35: #{resblock1d_forward.4} parent=31 // pred_region
        %p256 = scmp.lt.s32.totalorder %s21, 1
        %s257 = scalar_select %p256, %s21, 1
        %p258 = scmp.lt.s32.totalorder %s22, 0
        %s259 = scalar_select %p258, %s22, 0
        %s260 = sadd.s32 %s259, %s257
        %s261 = smul.addr %s260, 4
        %s262 = scalar_lea.vmem %s0, %s261
      $region36: #{resblock1d_forward.4} parent=31 // pred_fallthru
        _
      // Predicated region
      $region37: #{resblock1d_forward.4} parent=31 // pred_check
        %p263 = pneg %p76
      $region38: #{resblock1d_forward.4} parent=31 // pred_check_branch
        %265 = sbr.rel (%p263) target = $region40
      $region39: #{resblock1d_forward.4} parent=31 // pred_region
        %p266 = scmp.lt.s32.totalorder %s21, 1
        %s267 = scalar_select %p266, %s21, 1
        %p268 = scmp.lt.s32.totalorder %s22, 0
        %s269 = scalar_select %p268, %s22, 0
        %s270 = sadd.s32 %s269, %s267
        %s271 = smul.addr %s270, 4
        %s272 = scalar_lea.vmem %s1, %s271
      $region40: #{resblock1d_forward.4} parent=31 // pred_fallthru
        _
    $region32: #{resblock1d_forward.4} parent=5 // pred_fallthru
      _
    %p273 = scmp.le.s32.totalorder 1, %s14
    %p274 = scmp.lt.s32.totalorder %s14, 3
    %p275 = pnand %p273, %p274
    %p276 = pneg %p275
    // Predicated region
    $region41: #{resblock1d_forward.4} parent=5 // pred_check
      _
    $region42: #{resblock1d_forward.4} parent=5 // pred_check_branch
      %278 = sbr.rel (%p275) target = $region44
    $region43: #{resblock1d_forward.4} parent=5 // pred_region
      %s279 = ssub.s32 %s14, 1
      %p280 = scmp.lt.s32.totalorder %s23, 1
      %s281 = scalar_select %p280, %s23, 1
      %p282 = scmp.lt.s32.totalorder %s24, 0
      %s283 = scalar_select %p282, %s24, 0
      %s284 = sadd.s32 %s283, %s281
      %s285 = smul.addr %s284, 4
      %s286 = scalar_lea.vmem %s0, %s285
      %p287 = pneg %p54
      %p288 = pneg %p51
      %p289 = scmp.lt.s32.totalorder %s23, 1
      %s290 = scalar_select %p289, %s23, 1
      %p291 = scmp.lt.s32.totalorder %s24, 0
      %s292 = scalar_select %p291, %s24, 0
      %s293 = sadd.s32 %s292, %s290
      %s294 = smul.addr %s293, 4
      %s295 = scalar_lea.vmem %s1, %s294
      %p296 = pneg %p82
      %p297 = pneg %p79
      %p298 = pneg %p103
      %p299 = pneg %p100
      %p300 = pneg %p124
      %p301 = pneg %p121
      %p302 = pneg %p145
      %p303 = pneg %p142
      %p304 = pneg %p166
      %p305 = pneg %p163
      %p306 = pneg %p194
      %p307 = pneg %p191
      %p308 = scmp.lt.s32.totalorder %s23, 1
      %s309 = scalar_select %p308, %s23, 1
      %p310 = scmp.lt.s32.totalorder %s24, 0
      %s311 = scalar_select %p310, %s24, 0
      %s312 = sadd.s32 %s311, %s309
      %s313 = smul.addr %s312, 8
      %s314 = scalar_lea.vmem %s6, %s313
      %p315 = pneg %p222
      %p316 = pneg %p219
      %p317 = scmp.lt.s32.totalorder %s23, 1
      %s318 = scalar_select %p317, %s23, 1
      %p319 = scmp.lt.s32.totalorder %s24, 0
      %s320 = scalar_select %p319, %s24, 0
      %s321 = sadd.s32 %s320, %s318
      %s322 = smul.addr %s321, 8
      %s323 = scalar_lea.vmem %s7, %s322
      %p324 = scmp.lt.s32.totalorder %s23, 1
      %s325 = scalar_select %p324, %s23, 1
      %p326 = scmp.lt.s32.totalorder %s24, 0
      %s327 = scalar_select %p326, %s24, 0
      %s328 = sadd.s32 %s327, %s325
      %s329 = smul.addr %s328, 4
      %s330 = scalar_lea.vmem %s0, %s329
      %p331 = scmp.lt.s32.totalorder %s23, 1
      %s332 = scalar_select %p331, %s23, 1
      %p333 = scmp.lt.s32.totalorder %s24, 0
      %s334 = scalar_select %p333, %s24, 0
      %s335 = sadd.s32 %s334, %s332
      %s336 = smul.addr %s335, 4
      %s337 = scalar_lea.vmem %s1, %s336
      %p338 = scmp.lt.s32.totalorder %s23, 1
      %s339 = scalar_select %p338, %s23, 1
      %p340 = scmp.lt.s32.totalorder %s24, 0
      %s341 = scalar_select %p340, %s24, 0
      %s342 = sadd.s32 %s341, %s339
      %s343 = smul.addr %s342, 8
      %s344 = scalar_lea.vmem %s6, %s343
      %p345 = scmp.lt.s32.totalorder %s23, 1
      %s346 = scalar_select %p345, %s23, 1
      %p347 = scmp.lt.s32.totalorder %s24, 0
      %s348 = scalar_select %p347, %s24, 0
      %s349 = sadd.s32 %s348, %s346
      %s350 = smul.addr %s349, 8
      %s351 = scalar_lea.vmem %s7, %s350
      %v352 = vld [vmem:[%s330] sm:$0xf]
      %v353 = vld [vmem:[%s337] sm:$0xf]
      %355 = vrot.lane.b32.xlu0 %v353, 22
      %v356 = vpop.permute.xlu0 %355
      %vm358 = vcmask 179200
      %v359 = vsel %vm358, %v352, %v356
      %v360 = vld [vmem:[%s2] sm:$0xff]
      %s361 = scalar_lea.vmem %s2, 8
      %v362 = vld [vmem:[%s361] sm:$0xff]
      %364 = vrot.lane.b32.xlu0 %v359, 127
      %v365 = vpop.permute.xlu0 %364
      %vm366 = vcmask 31744
      %v368 = vsel %vm366, %v362, 0
      %vm370 = vcmask 1043456
      %v371 = vsel %vm370, %v365, 0
      %373 = vmatprep.subr.mxu0 0.0
      %374 = vmatpush1.msra.mxu0 %v371
      %375 = vmatprep.subr.mxu0 0.0
      %376 = vmatpush1.msra.mxu0 0.0
      %377 = vmatprep.subr.mxu0 0.0
      %378 = vmatpush1.msra.mxu0 0.0
      %379 = vmatprep.subr.mxu0 0.0
      %380 = vmatpush1.msra.mxu0 0.0
      %381 = vmatprep.subr.mxu0 0.0
      %382 = vmatpush1.msra.mxu0 0.0
      %383 = vmatprep.subr.mxu0 0.0
      %384 = vmatpush1.msra.mxu0 0.0
      %385 = vmatprep.subr.mxu0 0.0
      %386 = vmatpush1.msra.mxu0 0.0
      %387 = vmatprep.subr.mxu0 0.0
      %388 = vmatpush1.msra.mxu0 0.0
      %389 = vmatprep.subr.mxu0 0.0
      %390 = vmatpush1.msra.mxu0 0.0
      %391 = vmatprep.subr.mxu0 0.0
      %392 = vmatpush1.msra.mxu0 0.0
      %393 = vmatprep.subr.mxu0 0.0
      %394 = vmatpush1.msra.mxu0 0.0
      %395 = vmatprep.subr.mxu0 0.0
      %396 = vmatpush1.msra.mxu0 0.0
      %397 = vmatprep.subr.mxu0 0.0
      %398 = vmatpush1.msra.mxu0 0.0
      %399 = vmatprep.subr.mxu0 0.0
      %400 = vmatpush1.msra.mxu0 0.0
      %401 = vmatprep.subr.mxu0 0.0
      %402 = vmatpush1.msra.mxu0 0.0
      %403 = vmatprep.subr.mxu0 0.0
      %404 = vmatpush1.msra.mxu0 0.0
      %405 = vmatprep.subr.mxu0 0.0
      %406 = vmatpush1.msra.mxu0 0.0
      %407 = vmatprep.subr.mxu0 0.0
      %408 = vmatpush1.msra.mxu0 0.0
      %409 = vmatprep.subr.mxu0 0.0
      %410 = vmatpush1.msra.mxu0 0.0
      %411 = vmatprep.subr.mxu0 0.0
      %412 = vmatpush1.msra.mxu0 0.0
      %413 = vmatprep.subr.mxu0 0.0
      %414 = vmatpush1.msra.mxu0 0.0
      %415 = vmatprep.subr.mxu0 0.0
      %416 = vmatpush1.msra.mxu0 0.0
      %417 = vmatprep.subr.mxu0 0.0
      %418 = vmatpush1.msra.mxu0 0.0
      %419 = vmatprep.subr.mxu0 0.0
      %420 = vmatpush1.msra.mxu0 0.0
      %421 = vmatprep.subr.mxu0 0.0
      %422 = vmatpush1.msra.mxu0 0.0
      %423 = vmatprep.subr.mxu0 0.0
      %424 = vmatpush1.msra.mxu0 0.0
      %425 = vmatprep.subr.mxu0 0.0
      %426 = vmatpush1.msra.mxu0 0.0
      %427 = vmatprep.subr.mxu0 0.0
      %428 = vmatpush1.msra.mxu0 0.0
      %429 = vmatprep.subr.mxu0 0.0
      %430 = vmatpush1.msra.mxu0 0.0
      %431 = vmatprep.subr.mxu0 0.0
      %432 = vmatpush1.msra.mxu0 0.0
      %433 = vmatprep.subr.mxu0 0.0
      %434 = vmatpush1.msra.mxu0 0.0
      %435 = vmatprep.subr.mxu0 0.0
      %436 = vmatpush1.msra.mxu0 0.0
      %437 = vmatprep.mubr.f32.mxu0 0.0
      %438 = vmatmul.mubr.f32.gmra.mrb[0].mxu0 %v368
      %v439 = vpop.f32.mrb[0].mxu0
      %v440 = vadd.f32 0.0, %v439
      %v441 = vpop.f32.mrb[0].mxu0
      %442 = vdwg.mxu0
      %v444 = vsel %vm366, %v360, 0
      %v446 = vsel %vm370, %v359, 0
      %448 = vmatprep.subr.mxu0 0.0
      %449 = vmatpush1.msra.mxu0 %v446
      %450 = vmatprep.subr.mxu0 0.0
      %451 = vmatpush1.msra.mxu0 0.0
      %452 = vmatprep.subr.mxu0 0.0
      %453 = vmatpush1.msra.mxu0 0.0
      %454 = vmatprep.subr.mxu0 0.0
      %455 = vmatpush1.msra.mxu0 0.0
      %456 = vmatprep.subr.mxu0 0.0
      %457 = vmatpush1.msra.mxu0 0.0
      %458 = vmatprep.subr.mxu0 0.0
      %459 = vmatpush1.msra.mxu0 0.0
      %460 = vmatprep.subr.mxu0 0.0
      %461 = vmatpush1.msra.mxu0 0.0
      %462 = vmatprep.subr.mxu0 0.0
      %463 = vmatpush1.msra.mxu0 0.0
      %464 = vmatprep.subr.mxu0 0.0
      %465 = vmatpush1.msra.mxu0 0.0
      %466 = vmatprep.subr.mxu0 0.0
      %467 = vmatpush1.msra.mxu0 0.0
      %468 = vmatprep.subr.mxu0 0.0
      %469 = vmatpush1.msra.mxu0 0.0
      %470 = vmatprep.subr.mxu0 0.0
      %471 = vmatpush1.msra.mxu0 0.0
      %472 = vmatprep.subr.mxu0 0.0
      %473 = vmatpush1.msra.mxu0 0.0
      %474 = vmatprep.subr.mxu0 0.0
      %475 = vmatpush1.msra.mxu0 0.0
      %476 = vmatprep.subr.mxu0 0.0
      %477 = vmatpush1.msra.mxu0 0.0
      %478 = vmatprep.subr.mxu0 0.0
      %479 = vmatpush1.msra.mxu0 0.0
      %480 = vmatprep.subr.mxu0 0.0
      %481 = vmatpush1.msra.mxu0 0.0
      %482 = vmatprep.subr.mxu0 0.0
      %483 = vmatpush1.msra.mxu0 0.0
      %484 = vmatprep.subr.mxu0 0.0
      %485 = vmatpush1.msra.mxu0 0.0
      %486 = vmatprep.subr.mxu0 0.0
      %487 = vmatpush1.msra.mxu0 0.0
      %488 = vmatprep.subr.mxu0 0.0
      %489 = vmatpush1.msra.mxu0 0.0
      %490 = vmatprep.subr.mxu0 0.0
      %491 = vmatpush1.msra.mxu0 0.0
      %492 = vmatprep.subr.mxu0 0.0
      %493 = vmatpush1.msra.mxu0 0.0
      %494 = vmatprep.subr.mxu0 0.0
      %495 = vmatpush1.msra.mxu0 0.0
      %496 = vmatprep.subr.mxu0 0.0
      %497 = vmatpush1.msra.mxu0 0.0
      %498 = vmatprep.subr.mxu0 0.0
      %499 = vmatpush1.msra.mxu0 0.0
      %500 = vmatprep.subr.mxu0 0.0
      %501 = vmatpush1.msra.mxu0 0.0
      %502 = vmatprep.subr.mxu0 0.0
      %503 = vmatpush1.msra.mxu0 0.0
      %504 = vmatprep.subr.mxu0 0.0
      %505 = vmatpush1.msra.mxu0 0.0
      %506 = vmatprep.subr.mxu0 0.0
      %507 = vmatpush1.msra.mxu0 0.0
      %508 = vmatprep.subr.mxu0 0.0
      %509 = vmatpush1.msra.mxu0 0.0
      %510 = vmatprep.subr.mxu0 0.0
      %511 = vmatpush1.msra.mxu0 0.0
      %512 = vmatprep.mubr.f32.mxu0 0.0
      %513 = vmatmul.mubr.f32.gmra.mrb[0].mxu0 %v444
      %v514 = vpop.f32.mrb[0].mxu0
      %v515 = vadd.f32 %v440, %v514
      %v516 = vpop.f32.mrb[0].mxu0
      %517 = vdwg.mxu0
      %s518 = scalar_lea.vmem %s2, 16
      %v519 = vld [vmem:[%s518] sm:$0xff]
      %520 = vrot.lane.b32.xlu0 %v359, 126
      %v521 = vpop.permute.xlu0 %520
      %v523 = vsel %vm366, %v519, 0
      %v525 = vsel %vm370, %v521, 0
      %527 = vmatprep.subr.mxu0 0.0
      %528 = vmatpush1.msra.mxu0 %v525
      %529 = vmatprep.subr.mxu0 0.0
      %530 = vmatpush1.msra.mxu0 0.0
      %531 = vmatprep.subr.mxu0 0.0
      %532 = vmatpush1.msra.mxu0 0.0
      %533 = vmatprep.subr.mxu0 0.0
      %534 = vmatpush1.msra.mxu0 0.0
      %535 = vmatprep.subr.mxu0 0.0
      %536 = vmatpush1.msra.mxu0 0.0
      %537 = vmatprep.subr.mxu0 0.0
      %538 = vmatpush1.msra.mxu0 0.0
      %539 = vmatprep.subr.mxu0 0.0
      %540 = vmatpush1.msra.mxu0 0.0
      %541 = vmatprep.subr.mxu0 0.0
      %542 = vmatpush1.msra.mxu0 0.0
      %543 = vmatprep.subr.mxu0 0.0
      %544 = vmatpush1.msra.mxu0 0.0
      %545 = vmatprep.subr.mxu0 0.0
      %546 = vmatpush1.msra.mxu0 0.0
      %547 = vmatprep.subr.mxu0 0.0
      %548 = vmatpush1.msra.mxu0 0.0
      %549 = vmatprep.subr.mxu0 0.0
      %550 = vmatpush1.msra.mxu0 0.0
      %551 = vmatprep.subr.mxu0 0.0
      %552 = vmatpush1.msra.mxu0 0.0
      %553 = vmatprep.subr.mxu0 0.0
      %554 = vmatpush1.msra.mxu0 0.0
      %555 = vmatprep.subr.mxu0 0.0
      %556 = vmatpush1.msra.mxu0 0.0
      %557 = vmatprep.subr.mxu0 0.0
      %558 = vmatpush1.msra.mxu0 0.0
      %559 = vmatprep.subr.mxu0 0.0
      %560 = vmatpush1.msra.mxu0 0.0
      %561 = vmatprep.subr.mxu0 0.0
      %562 = vmatpush1.msra.mxu0 0.0
      %563 = vmatprep.subr.mxu0 0.0
      %564 = vmatpush1.msra.mxu0 0.0
      %565 = vmatprep.subr.mxu0 0.0
      %566 = vmatpush1.msra.mxu0 0.0
      %567 = vmatprep.subr.mxu0 0.0
      %568 = vmatpush1.msra.mxu0 0.0
      %569 = vmatprep.subr.mxu0 0.0
      %570 = vmatpush1.msra.mxu0 0.0
      %571 = vmatprep.subr.mxu0 0.0
      %572 = vmatpush1.msra.mxu0 0.0
      %573 = vmatprep.subr.mxu0 0.0
      %574 = vmatpush1.msra.mxu0 0.0
      %575 = vmatprep.subr.mxu0 0.0
      %576 = vmatpush1.msra.mxu0 0.0
      %577 = vmatprep.subr.mxu0 0.0
      %578 = vmatpush1.msra.mxu0 0.0
      %579 = vmatprep.subr.mxu0 0.0
      %580 = vmatpush1.msra.mxu0 0.0
      %581 = vmatprep.subr.mxu0 0.0
      %582 = vmatpush1.msra.mxu0 0.0
      %583 = vmatprep.subr.mxu0 0.0
      %584 = vmatpush1.msra.mxu0 0.0
      %585 = vmatprep.subr.mxu0 0.0
      %586 = vmatpush1.msra.mxu0 0.0
      %587 = vmatprep.subr.mxu0 0.0
      %588 = vmatpush1.msra.mxu0 0.0
      %589 = vmatprep.subr.mxu0 0.0
      %590 = vmatpush1.msra.mxu0 0.0
      %591 = vmatprep.mubr.f32.mxu0 0.0
      %592 = vmatmul.mubr.f32.gmra.mrb[0].mxu0 %v523
      %v593 = vpop.f32.mrb[0].mxu0
      %v594 = vadd.f32 0.0, %v593
      %v595 = vpop.f32.mrb[0].mxu0
      %596 = vdwg.mxu0
      %v597 = vadd.f32 %v515, %v594
      %v598 = vld [vmem:[%s4] sm:$0xff]
      %600 = vset.pattern.permute.xlu0 0
      %601 = vperm.xlu0 %600, %v598
      %v602 = vpop.permute.xlu0 %601
      %v604 = vmul.f32 %v597, %v602
      %v605 = vld [vmem:[%s5] sm:$0xff]
      %607 = vset.pattern.permute.xlu0 0
      %608 = vperm.xlu0 %607, %v605
      %v609 = vpop.permute.xlu0 %608
      %v611 = vadd.f32 %v604, %v609
      %v612 = vmax.f32 %v611, 0.0
      %s613 = smul.u32 %s24, 16
      %s614 = ssub.s32 %s613, 1
      %v615 = vlaneseq
      %v616 = vand.u32 %v615, 127
      %v617 = vstv %s614
      %v618 = vadd.s32 %v617, %v616
      %vm619 = vcmp.ge.s32.totalorder %v618, 0
      %vm620 = vcmp.lt.s32.totalorder %v618, 16
      %vm621 = vmand %vm619, %vm620
      %v622 = vsel %vm621, 1, 0
      %vm623 = vcmp.eq.s32.totalorder %v622, 1
      %v624 = vsel %vm623, %v612, 0.0
      %v625 = vld [vmem:[%s3] sm:$0xff]
      %s626 = scalar_lea.vmem %s3, 8
      %v627 = vld [vmem:[%s626] sm:$0xff]
      %629 = vrot.lane.b32.xlu0 %v624, 127
      %v630 = vpop.permute.xlu0 %629
      %vm632 = vcmask 64512
      %v634 = vsel %vm632, %v627, 0
      %636 = vmatprep.subr.mxu0 0.0
      %637 = vmatpush1.msra.mxu0 %v630
      %638 = vmatprep.subr.mxu0 0.0
      %639 = vmatpush1.msra.mxu0 0.0
      %640 = vmatprep.subr.mxu0 0.0
      %641 = vmatpush1.msra.mxu0 0.0
      %642 = vmatprep.subr.mxu0 0.0
      %643 = vmatpush1.msra.mxu0 0.0
      %644 = vmatprep.subr.mxu0 0.0
      %645 = vmatpush1.msra.mxu0 0.0
      %646 = vmatprep.subr.mxu0 0.0
      %647 = vmatpush1.msra.mxu0 0.0
      %648 = vmatprep.subr.mxu0 0.0
      %649 = vmatpush1.msra.mxu0 0.0
      %650 = vmatprep.subr.mxu0 0.0
      %651 = vmatpush1.msra.mxu0 0.0
      %652 = vmatprep.subr.mxu0 0.0
      %653 = vmatpush1.msra.mxu0 0.0
      %654 = vmatprep.subr.mxu0 0.0
      %655 = vmatpush1.msra.mxu0 0.0
      %656 = vmatprep.subr.mxu0 0.0
      %657 = vmatpush1.msra.mxu0 0.0
      %658 = vmatprep.subr.mxu0 0.0
      %659 = vmatpush1.msra.mxu0 0.0
      %660 = vmatprep.subr.mxu0 0.0
      %661 = vmatpush1.msra.mxu0 0.0
      %662 = vmatprep.subr.mxu0 0.0
      %663 = vmatpush1.msra.mxu0 0.0
      %664 = vmatprep.subr.mxu0 0.0
      %665 = vmatpush1.msra.mxu0 0.0
      %666 = vmatprep.subr.mxu0 0.0
      %667 = vmatpush1.msra.mxu0 0.0
      %668 = vmatprep.subr.mxu0 0.0
      %669 = vmatpush1.msra.mxu0 0.0
      %670 = vmatprep.subr.mxu0 0.0
      %671 = vmatpush1.msra.mxu0 0.0
      %672 = vmatprep.subr.mxu0 0.0
      %673 = vmatpush1.msra.mxu0 0.0
      %674 = vmatprep.subr.mxu0 0.0
      %675 = vmatpush1.msra.mxu0 0.0
      %676 = vmatprep.subr.mxu0 0.0
      %677 = vmatpush1.msra.mxu0 0.0
      %678 = vmatprep.subr.mxu0 0.0
      %679 = vmatpush1.msra.mxu0 0.0
      %680 = vmatprep.subr.mxu0 0.0
      %681 = vmatpush1.msra.mxu0 0.0
      %682 = vmatprep.subr.mxu0 0.0
      %683 = vmatpush1.msra.mxu0 0.0
      %684 = vmatprep.subr.mxu0 0.0
      %685 = vmatpush1.msra.mxu0 0.0
      %686 = vmatprep.subr.mxu0 0.0
      %687 = vmatpush1.msra.mxu0 0.0
      %688 = vmatprep.subr.mxu0 0.0
      %689 = vmatpush1.msra.mxu0 0.0
      %690 = vmatprep.subr.mxu0 0.0
      %691 = vmatpush1.msra.mxu0 0.0
      %692 = vmatprep.subr.mxu0 0.0
      %693 = vmatpush1.msra.mxu0 0.0
      %694 = vmatprep.subr.mxu0 0.0
      %695 = vmatpush1.msra.mxu0 0.0
      %696 = vmatprep.subr.mxu0 0.0
      %697 = vmatpush1.msra.mxu0 0.0
      %698 = vmatprep.subr.mxu0 0.0
      %699 = vmatpush1.msra.mxu0 0.0
      %700 = vmatprep.mubr.f32.mxu0 0.0
      %701 = vmatmul.mubr.f32.gmra.mrb[0].mxu0 %v634
      %v702 = vpop.f32.mrb[0].mxu0
      %v703 = vadd.f32 0.0, %v702
      %v704 = vpop.f32.mrb[0].mxu0
      %705 = vdwg.mxu0
      %v707 = vsel %vm632, %v625, 0
      %709 = vmatprep.subr.mxu0 0.0
      %710 = vmatpush1.msra.mxu0 %v624
      %711 = vmatprep.subr.mxu0 0.0
      %712 = vmatpush1.msra.mxu0 0.0
      %713 = vmatprep.subr.mxu0 0.0
      %714 = vmatpush1.msra.mxu0 0.0
      %715 = vmatprep.subr.mxu0 0.0
      %716 = vmatpush1.msra.mxu0 0.0
      %717 = vmatprep.subr.mxu0 0.0
      %718 = vmatpush1.msra.mxu0 0.0
      %719 = vmatprep.subr.mxu0 0.0
      %720 = vmatpush1.msra.mxu0 0.0
      %721 = vmatprep.subr.mxu0 0.0
      %722 = vmatpush1.msra.mxu0 0.0
      %723 = vmatprep.subr.mxu0 0.0
      %724 = vmatpush1.msra.mxu0 0.0
      %725 = vmatprep.subr.mxu0 0.0
      %726 = vmatpush1.msra.mxu0 0.0
      %727 = vmatprep.subr.mxu0 0.0
      %728 = vmatpush1.msra.mxu0 0.0
      %729 = vmatprep.subr.mxu0 0.0
      %730 = vmatpush1.msra.mxu0 0.0
      %731 = vmatprep.subr.mxu0 0.0
      %732 = vmatpush1.msra.mxu0 0.0
      %733 = vmatprep.subr.mxu0 0.0
      %734 = vmatpush1.msra.mxu0 0.0
      %735 = vmatprep.subr.mxu0 0.0
      %736 = vmatpush1.msra.mxu0 0.0
      %737 = vmatprep.subr.mxu0 0.0
      %738 = vmatpush1.msra.mxu0 0.0
      %739 = vmatprep.subr.mxu0 0.0
      %740 = vmatpush1.msra.mxu0 0.0
      %741 = vmatprep.subr.mxu0 0.0
      %742 = vmatpush1.msra.mxu0 0.0
      %743 = vmatprep.subr.mxu0 0.0
      %744 = vmatpush1.msra.mxu0 0.0
      %745 = vmatprep.subr.mxu0 0.0
      %746 = vmatpush1.msra.mxu0 0.0
      %747 = vmatprep.subr.mxu0 0.0
      %748 = vmatpush1.msra.mxu0 0.0
      %749 = vmatprep.subr.mxu0 0.0
      %750 = vmatpush1.msra.mxu0 0.0
      %751 = vmatprep.subr.mxu0 0.0
      %752 = vmatpush1.msra.mxu0 0.0
      %753 = vmatprep.subr.mxu0 0.0
      %754 = vmatpush1.msra.mxu0 0.0
      %755 = vmatprep.subr.mxu0 0.0
      %756 = vmatpush1.msra.mxu0 0.0
      %757 = vmatprep.subr.mxu0 0.0
      %758 = vmatpush1.msra.mxu0 0.0
      %759 = vmatprep.subr.mxu0 0.0
      %760 = vmatpush1.msra.mxu0 0.0
      %761 = vmatprep.subr.mxu0 0.0
      %762 = vmatpush1.msra.mxu0 0.0
      %763 = vmatprep.subr.mxu0 0.0
      %764 = vmatpush1.msra.mxu0 0.0
      %765 = vmatprep.subr.mxu0 0.0
      %766 = vmatpush1.msra.mxu0 0.0
      %767 = vmatprep.subr.mxu0 0.0
      %768 = vmatpush1.msra.mxu0 0.0
      %769 = vmatprep.subr.mxu0 0.0
      %770 = vmatpush1.msra.mxu0 0.0
      %771 = vmatprep.subr.mxu0 0.0
      %772 = vmatpush1.msra.mxu0 0.0
      %773 = vmatprep.mubr.f32.mxu0 0.0
      %774 = vmatmul.mubr.f32.gmra.mrb[0].mxu0 %v707
      %v775 = vpop.f32.mrb[0].mxu0
      %v776 = vadd.f32 %v703, %v775
      %v777 = vpop.f32.mrb[0].mxu0
      %778 = vdwg.mxu0
      %s779 = scalar_lea.vmem %s3, 16
      %v780 = vld [vmem:[%s779] sm:$0xff]
      %781 = vrot.lane.b32.xlu0 %v624, 126
      %v782 = vpop.permute.xlu0 %781
      %v785 = vsel %vm632, %v780, 0
      %787 = vmatprep.subr.mxu0 0.0
      %788 = vmatpush1.msra.mxu0 %v782
      %789 = vmatprep.subr.mxu0 0.0
      %790 = vmatpush1.msra.mxu0 0.0
      %791 = vmatprep.subr.mxu0 0.0
      %792 = vmatpush1.msra.mxu0 0.0
      %793 = vmatprep.subr.mxu0 0.0
      %794 = vmatpush1.msra.mxu0 0.0
      %795 = vmatprep.subr.mxu0 0.0
      %796 = vmatpush1.msra.mxu0 0.0
      %797 = vmatprep.subr.mxu0 0.0
      %798 = vmatpush1.msra.mxu0 0.0
      %799 = vmatprep.subr.mxu0 0.0
      %800 = vmatpush1.msra.mxu0 0.0
      %801 = vmatprep.subr.mxu0 0.0
      %802 = vmatpush1.msra.mxu0 0.0
      %803 = vmatprep.subr.mxu0 0.0
      %804 = vmatpush1.msra.mxu0 0.0
      %805 = vmatprep.subr.mxu0 0.0
      %806 = vmatpush1.msra.mxu0 0.0
      %807 = vmatprep.subr.mxu0 0.0
      %808 = vmatpush1.msra.mxu0 0.0
      %809 = vmatprep.subr.mxu0 0.0
      %810 = vmatpush1.msra.mxu0 0.0
      %811 = vmatprep.subr.mxu0 0.0
      %812 = vmatpush1.msra.mxu0 0.0
      %813 = vmatprep.subr.mxu0 0.0
      %814 = vmatpush1.msra.mxu0 0.0
      %815 = vmatprep.subr.mxu0 0.0
      %816 = vmatpush1.msra.mxu0 0.0
      %817 = vmatprep.subr.mxu0 0.0
      %818 = vmatpush1.msra.mxu0 0.0
      %819 = vmatprep.subr.mxu0 0.0
      %820 = vmatpush1.msra.mxu0 0.0
      %821 = vmatprep.subr.mxu0 0.0
      %822 = vmatpush1.msra.mxu0 0.0
      %823 = vmatprep.subr.mxu0 0.0
      %824 = vmatpush1.msra.mxu0 0.0
      %825 = vmatprep.subr.mxu0 0.0
      %826 = vmatpush1.msra.mxu0 0.0
      %827 = vmatprep.subr.mxu0 0.0
      %828 = vmatpush1.msra.mxu0 0.0
      %829 = vmatprep.subr.mxu0 0.0
      %830 = vmatpush1.msra.mxu0 0.0
      %831 = vmatprep.subr.mxu0 0.0
      %832 = vmatpush1.msra.mxu0 0.0
      %833 = vmatprep.subr.mxu0 0.0
      %834 = vmatpush1.msra.mxu0 0.0
      %835 = vmatprep.subr.mxu0 0.0
      %836 = vmatpush1.msra.mxu0 0.0
      %837 = vmatprep.subr.mxu0 0.0
      %838 = vmatpush1.msra.mxu0 0.0
      %839 = vmatprep.subr.mxu0 0.0
      %840 = vmatpush1.msra.mxu0 0.0
      %841 = vmatprep.subr.mxu0 0.0
      %842 = vmatpush1.msra.mxu0 0.0
      %843 = vmatprep.subr.mxu0 0.0
      %844 = vmatpush1.msra.mxu0 0.0
      %845 = vmatprep.subr.mxu0 0.0
      %846 = vmatpush1.msra.mxu0 0.0
      %847 = vmatprep.subr.mxu0 0.0
      %848 = vmatpush1.msra.mxu0 0.0
      %849 = vmatprep.subr.mxu0 0.0
      %850 = vmatpush1.msra.mxu0 0.0
      %851 = vmatprep.mubr.f32.mxu0 0.0
      %852 = vmatmul.mubr.f32.gmra.mrb[0].mxu0 %v785
      %v853 = vpop.f32.mrb[0].mxu0
      %v854 = vadd.f32 0.0, %v853
      %v855 = vpop.f32.mrb[0].mxu0
      %856 = vdwg.mxu0
      %v857 = vadd.f32 %v776, %v854
      %vm858 = vcmask 130048
      %859 = vst.msk [vmem:[%s344] sm:$0xff] %vm858, %v857
      %v860 = vsel %vm858, %v857, 0.0
      %861 = vadd.xlane.f32.xlu0 %v860
      %v862 = vpop.xlane.xlu0 %861
      %v863 = vmul.f32 %v857, %v857
      %v864 = vsel %vm858, %v863, 0.0
      %865 = vadd.xlane.f32.xlu0 %v864
      %v866 = vpop.xlane.xlu0 %865
      %vm867 = vcmask 7168
      %v868 = vsel %vm867, %v862, %v866
      %vm869 = vcmask 15360
      %870 = vst.msk [vmem:[%s351] sm:$0xff] %vm869, %v868
      %p871 = scmp.lt.s32.totalorder %s23, 1
      %s872 = scalar_select %p871, %s23, 1
      %p873 = scmp.lt.s32.totalorder %s24, 0
      %s874 = scalar_select %p873, %s24, 0
      %s875 = sadd.s32 %s874, %s872
      %s876 = smul.addr %s875, 8
      %s877 = scalar_lea.vmem %s6, %s876
      %p878 = scmp.lt.s32.totalorder %s23, 1
      %s879 = scalar_select %p878, %s23, 1
      %p880 = scmp.lt.s32.totalorder %s24, 0
      %s881 = scalar_select %p880, %s24, 0
      %s882 = sadd.s32 %s881, %s879
      %s883 = smul.addr %s882, 8
      %s884 = scalar_lea.vmem %s7, %s883
      // Predicated region
      $region45: #{resblock1d_forward.4} parent=43 // pred_check
        %p885 = pneg %p191
      $region46: #{resblock1d_forward.4} parent=43 // pred_check_branch
        %887 = sbr.rel (%p885) target = $region48
      $region47: #{resblock1d_forward.4} parent=43 // pred_region
        _
      $region48: #{resblock1d_forward.4} parent=43 // pred_fallthru
        _
      // Predicated region
      $region49: #{resblock1d_forward.4} parent=43 // pred_check
        %p888 = pneg %p219
      $region50: #{resblock1d_forward.4} parent=43 // pred_check_branch
        %890 = sbr.rel (%p888) target = $region52
      $region51: #{resblock1d_forward.4} parent=43 // pred_region
        _
      $region52: #{resblock1d_forward.4} parent=43 // pred_fallthru
        _
    $region44: #{resblock1d_forward.4} parent=5 // pred_fallthru
      _
    %p891 = scmp.le.s32.totalorder 2, %s14
    // Predicated region
    $region53: #{resblock1d_forward.4} parent=5 // pred_check
      %p892 = pneg %p891
    $region54: #{resblock1d_forward.4} parent=5 // pred_check_branch
      %894 = sbr.rel (%p892) target = $region56
    $region55: #{resblock1d_forward.4} parent=5 // pred_region
      %s895 = ssub.s32 %s14, 2
      // Predicated region
      $region57: #{resblock1d_forward.4} parent=55 // pred_check
        %p896 = pneg %p197
      $region58: #{resblock1d_forward.4} parent=55 // pred_check_branch
        %898 = sbr.rel (%p896) target = $region60
      $region59: #{resblock1d_forward.4} parent=55 // pred_region
        %p899 = scmp.lt.s32.totalorder %s25, 1
        %s900 = scalar_select %p899, %s25, 1
        %p901 = scmp.lt.s32.totalorder %s26, 0
        %s902 = scalar_select %p901, %s26, 0
        %s903 = sadd.s32 %s902, %s900
        %s904 = smul.addr %s903, 8
        %s905 = scalar_lea.vmem %s6, %s904
      $region60: #{resblock1d_forward.4} parent=55 // pred_fallthru
        _
      // Predicated region
      $region61: #{resblock1d_forward.4} parent=55 // pred_check
        %p906 = pneg %p225
      $region62: #{resblock1d_forward.4} parent=55 // pred_check_branch
        %908 = sbr.rel (%p906) target = $region64
      $region63: #{resblock1d_forward.4} parent=55 // pred_region
        %p909 = scmp.lt.s32.totalorder %s25, 1
        %s910 = scalar_select %p909, %s25, 1
        %p911 = scmp.lt.s32.totalorder %s26, 0
        %s912 = scalar_select %p911, %s26, 0
        %s913 = sadd.s32 %s912, %s910
        %s914 = smul.addr %s913, 8
        %s915 = scalar_lea.vmem %s7, %s914
      $region64: #{resblock1d_forward.4} parent=55 // pred_fallthru
        _
    $region56: #{resblock1d_forward.4} parent=5 // pred_fallthru
      _
  $region6: #{resblock1d_forward.4} parent=0 // loop_footer
    %s18 = sadd.s32 1, %s14
  $region7: #{resblock1d_forward.4} parent=0 // loop_footer_branch
    %13 = sbr.rel target = $region3
  $region8: #{resblock1d_forward.4} parent=0 // loop_exit
    _

</llo_original>
